<compile_context>
chip_gen: v5e
topology: v5e:2x2
jax: 0.10.0
libtpu: 0.0.40
codegen_flags: <defaults>
</compile_context>

<pallas_src>
import jax
import jax.numpy as jnp
from jax.experimental import pallas as pl
from jax.experimental.pallas import tpu as pltpu


def ssnet_kernel(x_ref, wx_ref, b_ref, whh1_ref, whh2_ref, wih2_ref,
                 wlin_ref, blin_ref, out_ref):
    H = whh1_ref.shape[0]
    B = out_ref.shape[0]
    TB = x_ref.shape[0]
    T = TB // B
    bf16 = jnp.bfloat16

    # ---- hoisted, batched input projection for BOTH cells (bias folded in) ----
    # columns [0:4H)  -> cell-1 gates from x_t          (gate order [i,f,o,g])
    # columns [4H:8H) -> cell-2 gates from flag = x_t[:, 0]
    # Kept as a register value (16 vregs), no VMEM scratch round-trip.
    xproj = (jnp.dot(x_ref[...], wx_ref[...],
                     preferred_element_type=jnp.float32)
             + b_ref[...])                                    # (T*B, 8H) f32

    def lstm_update(g, c_prev):
        # gate column order is [i | f | o | g] (permuted in the wrapper)
        s = jax.nn.sigmoid(g[:, :3 * H])          # one contiguous EUP pass
        i = s[:, 0:H]
        f = s[:, H:2 * H]
        o = s[:, 2 * H:3 * H]
        gg = jnp.tanh(g[:, 3 * H:4 * H])
        c_new = f * c_prev + i * gg
        h_new = o * jnp.tanh(c_new)
        return h_new, c_new

    z = jnp.zeros((B, H), jnp.float32)
    h0, c0, h1, c1 = z, z, z, z

    for t in range(T):                             # static unroll, T = 8
        xp = xproj[t * B:(t + 1) * B, :]           # static sublane-aligned slice

        # independent recurrent matmuls (bf16 operands, f32 accumulate)
        rec1 = jnp.dot(h0.astype(bf16), whh1_ref[...],
                       preferred_element_type=jnp.float32)    # (B, 4H)
        rec2 = jnp.dot(h1.astype(bf16), whh2_ref[...],
                       preferred_element_type=jnp.float32)    # (B, 4H)

        # ---- cell 1: lstm_cell(x_t, h0, c0) ----
        g1 = xp[:, :4 * H] + rec1
        h0, c0 = lstm_update(g1, c0)

        # ---- cell 2: lstm_cell2(concat(flag, h0_new), h1, c1) ----
        g2 = (xp[:, 4 * H:] + rec2
              + jnp.dot(h0.astype(bf16), wih2_ref[...],
                        preferred_element_type=jnp.float32))
        h1, c1 = lstm_update(g2, c1)

    # ---- outputs = linear(h1_T) (lane-padded to 128 for a dense store) ----
    out_ref[...] = (jnp.dot(h1.astype(bf16), wlin_ref[...],
                            preferred_element_type=jnp.float32)
                    + blin_ref[...])


def ssnet_forward(x_tbf, params):
    T, B, F = x_tbf.shape
    H = params["whh1"].shape[0]
    O = params["wlin"].shape[1]
    OP = 128  # padded output lane width
    assert O <= OP, "output dim must fit the padded 128-lane store"
    assert B % 8 == 0, "B must be a multiple of 8 (f32 sublane tiling)"
    bf16 = jnp.bfloat16

    def perm(w):
        # exact column permutation of gate blocks: [i|f|g|o] -> [i|f|o|g]
        return jnp.concatenate(
            [w[..., :2 * H], w[..., 3 * H:4 * H], w[..., 2 * H:3 * H]], axis=-1)

    # combined non-recurrent projection weight (F, 8H), bf16:
    #   x @ [ perm(W_ih1) | perm(W_if2 embedded in row 0) ]
    wif2_full = jnp.zeros((F, 4 * H), jnp.float32).at[0].set(params["wif2"][0])
    wx = jnp.concatenate([perm(params["wih1"]), perm(wif2_full)],
                         axis=1).astype(bf16)
    # fused bias kept in f32, 2-D for native sublane broadcast
    b = jnp.concatenate([perm(params["b1"]), perm(params["b2"])], axis=1)

    whh1p = perm(params["whh1"]).astype(bf16)                   # (H, 4H)
    whh2p = perm(params["whh2"]).astype(bf16)                   # (H, 4H)
    wih2p = perm(params["wih2"]).astype(bf16)                   # (H, 4H)

    wlin_pad = (jnp.zeros((H, OP), jnp.float32)
                .at[:, :O].set(params["wlin"])).astype(bf16)
    blin_pad = jnp.zeros((1, OP), jnp.float32).at[:, :O].set(params["blin"])

    x2d = x_tbf.reshape(T * B, F).astype(bf16)  # row t*B + b <-> (time t, batch b)

    def full_spec(shape):
        n = len(shape)
        return pl.BlockSpec(shape, lambda i, n=n: (0,) * n)

    out_pad = pl.pallas_call(
        ssnet_kernel,
        out_shape=jax.ShapeDtypeStruct((B, OP), jnp.float32),
        grid_spec=pltpu.PrefetchScalarGridSpec(
            num_scalar_prefetch=0,
            grid=(1,),
            in_specs=[full_spec((T * B, F)),      # x (all time steps, resident)
                      full_spec((F, 8 * H)),      # W_x (input proj, both cells)
                      full_spec((1, 8 * H)),      # fused bias (f32)
                      full_spec((H, 4 * H)),      # W_hh1 (perm, bf16)
                      full_spec((H, 4 * H)),      # W_hh2 (perm, bf16)
                      full_spec((H, 4 * H)),      # W_ih2 hidden rows (perm, bf16)
                      full_spec((H, OP)),         # padded linear weight (bf16)
                      full_spec((1, OP))],        # padded linear bias (f32)
            out_specs=full_spec((B, OP)),
        ),
        compiler_params=pltpu.CompilerParams(
            dimension_semantics=("arbitrary",)),
    )(x2d, wx, b, whh1p, whh2p, wih2p, wlin_pad, blin_pad)

    return out_pad[:, :O]


def ssnet_reference(x_tbf, p):
    """Pure-JAX f32 reference mirroring the PyTorch forward loop."""
    T, B, F = x_tbf.shape
    H = p["whh1"].shape[0]

    def lstm(x, h, c, wih, whh, b):
        g = x @ wih + h @ whh + b
        i, f, gg, o = jnp.split(g, 4, axis=1)
        c_new = jax.nn.sigmoid(f) * c + jax.nn.sigmoid(i) * jnp.tanh(gg)
        h_new = jax.nn.sigmoid(o) * jnp.tanh(c_new)
        return h_new, c_new

    wih2_full = jnp.concatenate([p["wif2"], p["wih2"]], axis=0)

    def step(carry, x_t):
        h0, c0, h1, c1 = carry
        h0, c0 = lstm(x_t, h0, c0, p["wih1"], p["whh1"], p["b1"][0])
        x2 = jnp.concatenate([x_t[:, 0:1], h0], axis=1)
        h1, c1 = lstm(x2, h1, c1, wih2_full, p["whh2"], p["b2"][0])
        return (h0, c0, h1, c1), None

    z = jnp.zeros((B, H), jnp.float32)
    (h0, c0, h1, c1), _ = jax.lax.scan(step, (z, z, z, z), x_tbf)
    return h1 @ p["wlin"] + p["blin"][0]


def ssnet_reference_bf16ops(x_tbf, p):
    """Reference with the kernel's precision policy (bf16 matmul operands,
    f32 accumulation, f32 gate math) for a tight-tolerance check."""
    T, B, F = x_tbf.shape
    H = p["whh1"].shape[0]
    bf16 = jnp.bfloat16

    def mm(a, w):
        return jnp.dot(a.astype(bf16), w.astype(bf16),
                       preferred_element_type=jnp.float32)

    def lstm(x, h, c, wih, whh, b):
        g = mm(x, wih) + mm(h, whh) + b
        i, f, gg, o = jnp.split(g, 4, axis=1)
        c_new = jax.nn.sigmoid(f) * c + jax.nn.sigmoid(i) * jnp.tanh(gg)
        h_new = jax.nn.sigmoid(o) * jnp.tanh(c_new)
        return h_new, c_new

    wih2_full = jnp.concatenate([p["wif2"], p["wih2"]], axis=0)

    def step(carry, x_t):
        h0, c0, h1, c1 = carry
        h0, c0 = lstm(x_t, h0, c0, p["wih1"], p["whh1"], p["b1"][0])
        x2 = jnp.concatenate([x_t[:, 0:1], h0], axis=1)
        h1, c1 = lstm(x2, h1, c1, wih2_full, p["whh2"], p["b2"][0])
        return (h0, c0, h1, c1), None

    z = jnp.zeros((B, H), jnp.float32)
    (h0, c0, h1, c1), _ = jax.lax.scan(step, (z, z, z, z), x_tbf)
    return mm(h1, p["wlin"]) + p["blin"][0]


if __name__ == "__main__":
    # Small shapes consistent with the module:
    #   batch=8, time_step=8, hidden=32, output=8,
    #   input feature dim F = input_size + 1 = 8 (feature 0 is the flag).
    B, T, H, O, F = 8, 8, 32, 8, 8

    key = jax.random.PRNGKey(0)
    ks = jax.random.split(key, 11)
    s = 0.1
    params = {
        "wih1": s * jax.random.normal(ks[0], (F, 4 * H), jnp.float32),
        "whh1": s * jax.random.normal(ks[1], (H, 4 * H), jnp.float32),
        "b1":   s * jax.random.normal(ks[2], (1, 4 * H), jnp.float32),
        "wif2": s * jax.random.normal(ks[3], (1, 4 * H), jnp.float32),
        "wih2": s * jax.random.normal(ks[4], (H, 4 * H), jnp.float32),
        "whh2": s * jax.random.normal(ks[5], (H, 4 * H), jnp.float32),
        "b2":   s * jax.random.normal(ks[6], (1, 4 * H), jnp.float32),
        "wlin": s * jax.random.normal(ks[7], (H, O), jnp.float32),
        "blin": s * jax.random.normal(ks[8], (1, O), jnp.float32),
    }

    # PyTorch forward consumes input_data of shape (B, T, F); kernel uses (T, B, F).
    x_btf = jax.random.normal(ks[9], (B, T, F), jnp.float32)
    x_tbf = jnp.transpose(x_btf, (1, 0, 2))

    out = ssnet_forward(x_tbf, params)
    out = jax.block_until_ready(out)
    assert out.shape == (B, O)

    # Tight check against a precision-matched (bf16-operand) reference.
    ref_bf = jax.block_until_ready(ssnet_reference_bf16ops(x_tbf, params))
    assert jnp.allclose(out, ref_bf, atol=5e-4, rtol=5e-4), (
        f"max err vs bf16-op ref {jnp.max(jnp.abs(out - ref_bf))}")

    # Looser check against the full-f32 reference (bounds bf16 quantization).
    ref_f32 = jax.block_until_ready(ssnet_reference(x_tbf, params))
    assert jnp.allclose(out, ref_f32, atol=5e-3, rtol=5e-3), (
        f"max err vs f32 ref {jnp.max(jnp.abs(out - ref_f32))}")

    print("KERNEL_OK")
</pallas_src>

<mosaic_0001>
module attributes {stable_mosaic.version = 11 : i64} {
  func.func @ssnet_kernel(%arg0: i32, %arg1: memref<64x8xbf16, #tpu.memory_space<vmem>>, %arg2: memref<8x256xbf16, #tpu.memory_space<vmem>>, %arg3: memref<1x256xf32, #tpu.memory_space<vmem>>, %arg4: memref<32x128xbf16, #tpu.memory_space<vmem>>, %arg5: memref<32x128xbf16, #tpu.memory_space<vmem>>, %arg6: memref<32x128xbf16, #tpu.memory_space<vmem>>, %arg7: memref<32x128xbf16, #tpu.memory_space<vmem>>, %arg8: memref<1x128xf32, #tpu.memory_space<vmem>>, %arg9: memref<8x128xf32, #tpu.memory_space<vmem>>) attributes {dimension_semantics = [#tpu.dimension_semantics<arbitrary>], iteration_bounds = array<i64: 1>, scalar_prefetch = 0 : i64, scratch_operands = 0 : i64, tpu.core_type = #tpu.core_type<tc>, window_params = [{pipeline_mode = #tpu.pipeline_mode<synchronous>, transform_indices = @transform_0, window_bounds = array<i64: 64, 8>}, {pipeline_mode = #tpu.pipeline_mode<synchronous>, transform_indices = @transform_1, window_bounds = array<i64: 8, 256>}, {pipeline_mode = #tpu.pipeline_mode<synchronous>, transform_indices = @transform_2, window_bounds = array<i64: 1, 256>}, {pipeline_mode = #tpu.pipeline_mode<synchronous>, transform_indices = @transform_3, window_bounds = array<i64: 32, 128>}, {pipeline_mode = #tpu.pipeline_mode<synchronous>, transform_indices = @transform_4, window_bounds = array<i64: 32, 128>}, {pipeline_mode = #tpu.pipeline_mode<synchronous>, transform_indices = @transform_5, window_bounds = array<i64: 32, 128>}, {pipeline_mode = #tpu.pipeline_mode<synchronous>, transform_indices = @transform_6, window_bounds = array<i64: 32, 128>}, {pipeline_mode = #tpu.pipeline_mode<synchronous>, transform_indices = @transform_7, window_bounds = array<i64: 1, 128>}, {pipeline_mode = #tpu.pipeline_mode<synchronous>, transform_indices = @transform_8, window_bounds = array<i64: 8, 128>}]} {
    %c0 = arith.constant 0 : index
    %c0_0 = arith.constant 0 : index
    %0 = vector.load %arg1[%c0, %c0_0] : memref<64x8xbf16, #tpu.memory_space<vmem>>, vector<64x8xbf16>
    %c0_1 = arith.constant 0 : index
    %c0_2 = arith.constant 0 : index
    %1 = vector.load %arg2[%c0_1, %c0_2] : memref<8x256xbf16, #tpu.memory_space<vmem>>, vector<8x256xbf16>
    %cst = arith.constant dense<0.000000e+00> : vector<64x256xf32>
    %2 = tpu.matmul %0, %1, %cst {dimension_numbers = #tpu.dot_dimension_numbers<[1], [0], [0], [1], [0, 0, 1, 1], [], []>} : vector<64x8xbf16>, vector<8x256xbf16>, vector<64x256xf32> -> vector<64x256xf32>
    %c0_3 = arith.constant 0 : index
    %c0_4 = arith.constant 0 : index
    %3 = vector.load %arg3[%c0_3, %c0_4] : memref<1x256xf32, #tpu.memory_space<vmem>>, vector<1x256xf32>
    %4 = vector.broadcast %3 : vector<1x256xf32> to vector<64x256xf32>
    %5 = arith.addf %2, %4 : vector<64x256xf32>
    %cst_5 = arith.constant 0.000000e+00 : f32
    %6 = vector.broadcast %cst_5 : f32 to vector<8x32xf32>
    %7 = vector.extract_strided_slice %5 {offsets = [0, 0], sizes = [8, 256], strides = [1, 1]} : vector<64x256xf32> to vector<8x256xf32>
    %8 = arith.truncf %6 : vector<8x32xf32> to vector<8x32xbf16>
    %c0_6 = arith.constant 0 : index
    %c0_7 = arith.constant 0 : index
    %9 = vector.load %arg4[%c0_6, %c0_7] : memref<32x128xbf16, #tpu.memory_space<vmem>>, vector<32x128xbf16>
    %cst_8 = arith.constant dense<0.000000e+00> : vector<8x128xf32>
    %10 = tpu.matmul %8, %9, %cst_8 {dimension_numbers = #tpu.dot_dimension_numbers<[1], [0], [0], [1], [0, 0, 1, 1], [], []>} : vector<8x32xbf16>, vector<32x128xbf16>, vector<8x128xf32> -> vector<8x128xf32>
    %11 = arith.truncf %6 : vector<8x32xf32> to vector<8x32xbf16>
    %c0_9 = arith.constant 0 : index
    %c0_10 = arith.constant 0 : index
    %12 = vector.load %arg5[%c0_9, %c0_10] : memref<32x128xbf16, #tpu.memory_space<vmem>>, vector<32x128xbf16>
    %cst_11 = arith.constant dense<0.000000e+00> : vector<8x128xf32>
    %13 = tpu.matmul %11, %12, %cst_11 {dimension_numbers = #tpu.dot_dimension_numbers<[1], [0], [0], [1], [0, 0, 1, 1], [], []>} : vector<8x32xbf16>, vector<32x128xbf16>, vector<8x128xf32> -> vector<8x128xf32>
    %14 = vector.extract_strided_slice %7 {offsets = [0, 0], sizes = [8, 128], strides = [1, 1]} : vector<8x256xf32> to vector<8x128xf32>
    %15 = arith.addf %14, %10 : vector<8x128xf32>
    %16 = vector.extract_strided_slice %15 {offsets = [0, 0], sizes = [8, 96], strides = [1, 1]} : vector<8x128xf32> to vector<8x96xf32>
    %17 = arith.negf %16 : vector<8x96xf32>
    %18 = math.exp %17 : vector<8x96xf32>
    %cst_12 = arith.constant 1.000000e+00 : f32
    %19 = vector.broadcast %cst_12 : f32 to vector<8x96xf32>
    %20 = arith.addf %19, %18 : vector<8x96xf32>
    %21 = arith.divf %19, %20 : vector<8x96xf32>
    %22 = vector.extract_strided_slice %21 {offsets = [0, 0], sizes = [8, 32], strides = [1, 1]} : vector<8x96xf32> to vector<8x32xf32>
    %23 = vector.extract_strided_slice %21 {offsets = [0, 32], sizes = [8, 32], strides = [1, 1]} : vector<8x96xf32> to vector<8x32xf32>
    %24 = vector.extract_strided_slice %21 {offsets = [0, 64], sizes = [8, 32], strides = [1, 1]} : vector<8x96xf32> to vector<8x32xf32>
    %25 = vector.extract_strided_slice %15 {offsets = [0, 96], sizes = [8, 32], strides = [1, 1]} : vector<8x128xf32> to vector<8x32xf32>
    %26 = math.tanh %25 : vector<8x32xf32>
    %27 = arith.mulf %23, %6 : vector<8x32xf32>
    %28 = arith.mulf %22, %26 : vector<8x32xf32>
    %29 = arith.addf %27, %28 : vector<8x32xf32>
    %30 = math.tanh %29 : vector<8x32xf32>
    %31 = arith.mulf %24, %30 : vector<8x32xf32>
    %32 = vector.extract_strided_slice %7 {offsets = [0, 128], sizes = [8, 128], strides = [1, 1]} : vector<8x256xf32> to vector<8x128xf32>
    %33 = arith.addf %32, %13 : vector<8x128xf32>
    %34 = arith.truncf %31 : vector<8x32xf32> to vector<8x32xbf16>
    %c0_13 = arith.constant 0 : index
    %c0_14 = arith.constant 0 : index
    %35 = vector.load %arg6[%c0_13, %c0_14] : memref<32x128xbf16, #tpu.memory_space<vmem>>, vector<32x128xbf16>
    %cst_15 = arith.constant dense<0.000000e+00> : vector<8x128xf32>
    %36 = tpu.matmul %34, %35, %cst_15 {dimension_numbers = #tpu.dot_dimension_numbers<[1], [0], [0], [1], [0, 0, 1, 1], [], []>} : vector<8x32xbf16>, vector<32x128xbf16>, vector<8x128xf32> -> vector<8x128xf32>
    %37 = arith.addf %33, %36 : vector<8x128xf32>
    %38 = vector.extract_strided_slice %37 {offsets = [0, 0], sizes = [8, 96], strides = [1, 1]} : vector<8x128xf32> to vector<8x96xf32>
    %39 = arith.negf %38 : vector<8x96xf32>
    %40 = math.exp %39 : vector<8x96xf32>
    %cst_16 = arith.constant 1.000000e+00 : f32
    %41 = vector.broadcast %cst_16 : f32 to vector<8x96xf32>
    %42 = arith.addf %41, %40 : vector<8x96xf32>
    %43 = arith.divf %41, %42 : vector<8x96xf32>
    %44 = vector.extract_strided_slice %43 {offsets = [0, 0], sizes = [8, 32], strides = [1, 1]} : vector<8x96xf32> to vector<8x32xf32>
    %45 = vector.extract_strided_slice %43 {offsets = [0, 32], sizes = [8, 32], strides = [1, 1]} : vector<8x96xf32> to vector<8x32xf32>
    %46 = vector.extract_strided_slice %43 {offsets = [0, 64], sizes = [8, 32], strides = [1, 1]} : vector<8x96xf32> to vector<8x32xf32>
    %47 = vector.extract_strided_slice %37 {offsets = [0, 96], sizes = [8, 32], strides = [1, 1]} : vector<8x128xf32> to vector<8x32xf32>
    %48 = math.tanh %47 : vector<8x32xf32>
    %49 = arith.mulf %45, %6 : vector<8x32xf32>
    %50 = arith.mulf %44, %48 : vector<8x32xf32>
    %51 = arith.addf %49, %50 : vector<8x32xf32>
    %52 = math.tanh %51 : vector<8x32xf32>
    %53 = arith.mulf %46, %52 : vector<8x32xf32>
    %54 = vector.extract_strided_slice %5 {offsets = [8, 0], sizes = [8, 256], strides = [1, 1]} : vector<64x256xf32> to vector<8x256xf32>
    %55 = arith.truncf %31 : vector<8x32xf32> to vector<8x32xbf16>
    %c0_17 = arith.constant 0 : index
    %c0_18 = arith.constant 0 : index
    %56 = vector.load %arg4[%c0_17, %c0_18] : memref<32x128xbf16, #tpu.memory_space<vmem>>, vector<32x128xbf16>
    %cst_19 = arith.constant dense<0.000000e+00> : vector<8x128xf32>
    %57 = tpu.matmul %55, %56, %cst_19 {dimension_numbers = #tpu.dot_dimension_numbers<[1], [0], [0], [1], [0, 0, 1, 1], [], []>} : vector<8x32xbf16>, vector<32x128xbf16>, vector<8x128xf32> -> vector<8x128xf32>
    %58 = arith.truncf %53 : vector<8x32xf32> to vector<8x32xbf16>
    %c0_20 = arith.constant 0 : index
    %c0_21 = arith.constant 0 : index
    %59 = vector.load %arg5[%c0_20, %c0_21] : memref<32x128xbf16, #tpu.memory_space<vmem>>, vector<32x128xbf16>
    %cst_22 = arith.constant dense<0.000000e+00> : vector<8x128xf32>
    %60 = tpu.matmul %58, %59, %cst_22 {dimension_numbers = #tpu.dot_dimension_numbers<[1], [0], [0], [1], [0, 0, 1, 1], [], []>} : vector<8x32xbf16>, vector<32x128xbf16>, vector<8x128xf32> -> vector<8x128xf32>
    %61 = vector.extract_strided_slice %54 {offsets = [0, 0], sizes = [8, 128], strides = [1, 1]} : vector<8x256xf32> to vector<8x128xf32>
    %62 = arith.addf %61, %57 : vector<8x128xf32>
    %63 = vector.extract_strided_slice %62 {offsets = [0, 0], sizes = [8, 96], strides = [1, 1]} : vector<8x128xf32> to vector<8x96xf32>
    %64 = arith.negf %63 : vector<8x96xf32>
    %65 = math.exp %64 : vector<8x96xf32>
    %cst_23 = arith.constant 1.000000e+00 : f32
    %66 = vector.broadcast %cst_23 : f32 to vector<8x96xf32>
    %67 = arith.addf %66, %65 : vector<8x96xf32>
    %68 = arith.divf %66, %67 : vector<8x96xf32>
    %69 = vector.extract_strided_slice %68 {offsets = [0, 0], sizes = [8, 32], strides = [1, 1]} : vector<8x96xf32> to vector<8x32xf32>
    %70 = vector.extract_strided_slice %68 {offsets = [0, 32], sizes = [8, 32], strides = [1, 1]} : vector<8x96xf32> to vector<8x32xf32>
    %71 = vector.extract_strided_slice %68 {offsets = [0, 64], sizes = [8, 32], strides = [1, 1]} : vector<8x96xf32> to vector<8x32xf32>
    %72 = vector.extract_strided_slice %62 {offsets = [0, 96], sizes = [8, 32], strides = [1, 1]} : vector<8x128xf32> to vector<8x32xf32>
    %73 = math.tanh %72 : vector<8x32xf32>
    %74 = arith.mulf %70, %29 : vector<8x32xf32>
    %75 = arith.mulf %69, %73 : vector<8x32xf32>
    %76 = arith.addf %74, %75 : vector<8x32xf32>
    %77 = math.tanh %76 : vector<8x32xf32>
    %78 = arith.mulf %71, %77 : vector<8x32xf32>
    %79 = vector.extract_strided_slice %54 {offsets = [0, 128], sizes = [8, 128], strides = [1, 1]} : vector<8x256xf32> to vector<8x128xf32>
    %80 = arith.addf %79, %60 : vector<8x128xf32>
    %81 = arith.truncf %78 : vector<8x32xf32> to vector<8x32xbf16>
    %c0_24 = arith.constant 0 : index
    %c0_25 = arith.constant 0 : index
    %82 = vector.load %arg6[%c0_24, %c0_25] : memref<32x128xbf16, #tpu.memory_space<vmem>>, vector<32x128xbf16>
    %cst_26 = arith.constant dense<0.000000e+00> : vector<8x128xf32>
    %83 = tpu.matmul %81, %82, %cst_26 {dimension_numbers = #tpu.dot_dimension_numbers<[1], [0], [0], [1], [0, 0, 1, 1], [], []>} : vector<8x32xbf16>, vector<32x128xbf16>, vector<8x128xf32> -> vector<8x128xf32>
    %84 = arith.addf %80, %83 : vector<8x128xf32>
    %85 = vector.extract_strided_slice %84 {offsets = [0, 0], sizes = [8, 96], strides = [1, 1]} : vector<8x128xf32> to vector<8x96xf32>
    %86 = arith.negf %85 : vector<8x96xf32>
    %87 = math.exp %86 : vector<8x96xf32>
    %cst_27 = arith.constant 1.000000e+00 : f32
    %88 = vector.broadcast %cst_27 : f32 to vector<8x96xf32>
    %89 = arith.addf %88, %87 : vector<8x96xf32>
    %90 = arith.divf %88, %89 : vector<8x96xf32>
    %91 = vector.extract_strided_slice %90 {offsets = [0, 0], sizes = [8, 32], strides = [1, 1]} : vector<8x96xf32> to vector<8x32xf32>
    %92 = vector.extract_strided_slice %90 {offsets = [0, 32], sizes = [8, 32], strides = [1, 1]} : vector<8x96xf32> to vector<8x32xf32>
    %93 = vector.extract_strided_slice %90 {offsets = [0, 64], sizes = [8, 32], strides = [1, 1]} : vector<8x96xf32> to vector<8x32xf32>
    %94 = vector.extract_strided_slice %84 {offsets = [0, 96], sizes = [8, 32], strides = [1, 1]} : vector<8x128xf32> to vector<8x32xf32>
    %95 = math.tanh %94 : vector<8x32xf32>
    %96 = arith.mulf %92, %51 : vector<8x32xf32>
    %97 = arith.mulf %91, %95 : vector<8x32xf32>
    %98 = arith.addf %96, %97 : vector<8x32xf32>
    %99 = math.tanh %98 : vector<8x32xf32>
    %100 = arith.mulf %93, %99 : vector<8x32xf32>
    %101 = vector.extract_strided_slice %5 {offsets = [16, 0], sizes = [8, 256], strides = [1, 1]} : vector<64x256xf32> to vector<8x256xf32>
    %102 = arith.truncf %78 : vector<8x32xf32> to vector<8x32xbf16>
    %c0_28 = arith.constant 0 : index
    %c0_29 = arith.constant 0 : index
    %103 = vector.load %arg4[%c0_28, %c0_29] : memref<32x128xbf16, #tpu.memory_space<vmem>>, vector<32x128xbf16>
    %cst_30 = arith.constant dense<0.000000e+00> : vector<8x128xf32>
    %104 = tpu.matmul %102, %103, %cst_30 {dimension_numbers = #tpu.dot_dimension_numbers<[1], [0], [0], [1], [0, 0, 1, 1], [], []>} : vector<8x32xbf16>, vector<32x128xbf16>, vector<8x128xf32> -> vector<8x128xf32>
    %105 = arith.truncf %100 : vector<8x32xf32> to vector<8x32xbf16>
    %c0_31 = arith.constant 0 : index
    %c0_32 = arith.constant 0 : index
    %106 = vector.load %arg5[%c0_31, %c0_32] : memref<32x128xbf16, #tpu.memory_space<vmem>>, vector<32x128xbf16>
    %cst_33 = arith.constant dense<0.000000e+00> : vector<8x128xf32>
    %107 = tpu.matmul %105, %106, %cst_33 {dimension_numbers = #tpu.dot_dimension_numbers<[1], [0], [0], [1], [0, 0, 1, 1], [], []>} : vector<8x32xbf16>, vector<32x128xbf16>, vector<8x128xf32> -> vector<8x128xf32>
    %108 = vector.extract_strided_slice %101 {offsets = [0, 0], sizes = [8, 128], strides = [1, 1]} : vector<8x256xf32> to vector<8x128xf32>
    %109 = arith.addf %108, %104 : vector<8x128xf32>
    %110 = vector.extract_strided_slice %109 {offsets = [0, 0], sizes = [8, 96], strides = [1, 1]} : vector<8x128xf32> to vector<8x96xf32>
    %111 = arith.negf %110 : vector<8x96xf32>
    %112 = math.exp %111 : vector<8x96xf32>
    %cst_34 = arith.constant 1.000000e+00 : f32
    %113 = vector.broadcast %cst_34 : f32 to vector<8x96xf32>
    %114 = arith.addf %113, %112 : vector<8x96xf32>
    %115 = arith.divf %113, %114 : vector<8x96xf32>
    %116 = vector.extract_strided_slice %115 {offsets = [0, 0], sizes = [8, 32], strides = [1, 1]} : vector<8x96xf32> to vector<8x32xf32>
    %117 = vector.extract_strided_slice %115 {offsets = [0, 32], sizes = [8, 32], strides = [1, 1]} : vector<8x96xf32> to vector<8x32xf32>
    %118 = vector.extract_strided_slice %115 {offsets = [0, 64], sizes = [8, 32], strides = [1, 1]} : vector<8x96xf32> to vector<8x32xf32>
    %119 = vector.extract_strided_slice %109 {offsets = [0, 96], sizes = [8, 32], strides = [1, 1]} : vector<8x128xf32> to vector<8x32xf32>
    %120 = math.tanh %119 : vector<8x32xf32>
    %121 = arith.mulf %117, %76 : vector<8x32xf32>
    %122 = arith.mulf %116, %120 : vector<8x32xf32>
    %123 = arith.addf %121, %122 : vector<8x32xf32>
    %124 = math.tanh %123 : vector<8x32xf32>
    %125 = arith.mulf %118, %124 : vector<8x32xf32>
    %126 = vector.extract_strided_slice %101 {offsets = [0, 128], sizes = [8, 128], strides = [1, 1]} : vector<8x256xf32> to vector<8x128xf32>
    %127 = arith.addf %126, %107 : vector<8x128xf32>
    %128 = arith.truncf %125 : vector<8x32xf32> to vector<8x32xbf16>
    %c0_35 = arith.constant 0 : index
    %c0_36 = arith.constant 0 : index
    %129 = vector.load %arg6[%c0_35, %c0_36] : memref<32x128xbf16, #tpu.memory_space<vmem>>, vector<32x128xbf16>
    %cst_37 = arith.constant dense<0.000000e+00> : vector<8x128xf32>
    %130 = tpu.matmul %128, %129, %cst_37 {dimension_numbers = #tpu.dot_dimension_numbers<[1], [0], [0], [1], [0, 0, 1, 1], [], []>} : vector<8x32xbf16>, vector<32x128xbf16>, vector<8x128xf32> -> vector<8x128xf32>
    %131 = arith.addf %127, %130 : vector<8x128xf32>
    %132 = vector.extract_strided_slice %131 {offsets = [0, 0], sizes = [8, 96], strides = [1, 1]} : vector<8x128xf32> to vector<8x96xf32>
    %133 = arith.negf %132 : vector<8x96xf32>
    %134 = math.exp %133 : vector<8x96xf32>
    %cst_38 = arith.constant 1.000000e+00 : f32
    %135 = vector.broadcast %cst_38 : f32 to vector<8x96xf32>
    %136 = arith.addf %135, %134 : vector<8x96xf32>
    %137 = arith.divf %135, %136 : vector<8x96xf32>
    %138 = vector.extract_strided_slice %137 {offsets = [0, 0], sizes = [8, 32], strides = [1, 1]} : vector<8x96xf32> to vector<8x32xf32>
    %139 = vector.extract_strided_slice %137 {offsets = [0, 32], sizes = [8, 32], strides = [1, 1]} : vector<8x96xf32> to vector<8x32xf32>
    %140 = vector.extract_strided_slice %137 {offsets = [0, 64], sizes = [8, 32], strides = [1, 1]} : vector<8x96xf32> to vector<8x32xf32>
    %141 = vector.extract_strided_slice %131 {offsets = [0, 96], sizes = [8, 32], strides = [1, 1]} : vector<8x128xf32> to vector<8x32xf32>
    %142 = math.tanh %141 : vector<8x32xf32>
    %143 = arith.mulf %139, %98 : vector<8x32xf32>
    %144 = arith.mulf %138, %142 : vector<8x32xf32>
    %145 = arith.addf %143, %144 : vector<8x32xf32>
    %146 = math.tanh %145 : vector<8x32xf32>
    %147 = arith.mulf %140, %146 : vector<8x32xf32>
    %148 = vector.extract_strided_slice %5 {offsets = [24, 0], sizes = [8, 256], strides = [1, 1]} : vector<64x256xf32> to vector<8x256xf32>
    %149 = arith.truncf %125 : vector<8x32xf32> to vector<8x32xbf16>
    %c0_39 = arith.constant 0 : index
    %c0_40 = arith.constant 0 : index
    %150 = vector.load %arg4[%c0_39, %c0_40] : memref<32x128xbf16, #tpu.memory_space<vmem>>, vector<32x128xbf16>
    %cst_41 = arith.constant dense<0.000000e+00> : vector<8x128xf32>
    %151 = tpu.matmul %149, %150, %cst_41 {dimension_numbers = #tpu.dot_dimension_numbers<[1], [0], [0], [1], [0, 0, 1, 1], [], []>} : vector<8x32xbf16>, vector<32x128xbf16>, vector<8x128xf32> -> vector<8x128xf32>
    %152 = arith.truncf %147 : vector<8x32xf32> to vector<8x32xbf16>
    %c0_42 = arith.constant 0 : index
    %c0_43 = arith.constant 0 : index
    %153 = vector.load %arg5[%c0_42, %c0_43] : memref<32x128xbf16, #tpu.memory_space<vmem>>, vector<32x128xbf16>
    %cst_44 = arith.constant dense<0.000000e+00> : vector<8x128xf32>
    %154 = tpu.matmul %152, %153, %cst_44 {dimension_numbers = #tpu.dot_dimension_numbers<[1], [0], [0], [1], [0, 0, 1, 1], [], []>} : vector<8x32xbf16>, vector<32x128xbf16>, vector<8x128xf32> -> vector<8x128xf32>
    %155 = vector.extract_strided_slice %148 {offsets = [0, 0], sizes = [8, 128], strides = [1, 1]} : vector<8x256xf32> to vector<8x128xf32>
    %156 = arith.addf %155, %151 : vector<8x128xf32>
    %157 = vector.extract_strided_slice %156 {offsets = [0, 0], sizes = [8, 96], strides = [1, 1]} : vector<8x128xf32> to vector<8x96xf32>
    %158 = arith.negf %157 : vector<8x96xf32>
    %159 = math.exp %158 : vector<8x96xf32>
    %cst_45 = arith.constant 1.000000e+00 : f32
    %160 = vector.broadcast %cst_45 : f32 to vector<8x96xf32>
    %161 = arith.addf %160, %159 : vector<8x96xf32>
    %162 = arith.divf %160, %161 : vector<8x96xf32>
    %163 = vector.extract_strided_slice %162 {offsets = [0, 0], sizes = [8, 32], strides = [1, 1]} : vector<8x96xf32> to vector<8x32xf32>
    %164 = vector.extract_strided_slice %162 {offsets = [0, 32], sizes = [8, 32], strides = [1, 1]} : vector<8x96xf32> to vector<8x32xf32>
    %165 = vector.extract_strided_slice %162 {offsets = [0, 64], sizes = [8, 32], strides = [1, 1]} : vector<8x96xf32> to vector<8x32xf32>
    %166 = vector.extract_strided_slice %156 {offsets = [0, 96], sizes = [8, 32], strides = [1, 1]} : vector<8x128xf32> to vector<8x32xf32>
    %167 = math.tanh %166 : vector<8x32xf32>
    %168 = arith.mulf %164, %123 : vector<8x32xf32>
    %169 = arith.mulf %163, %167 : vector<8x32xf32>
    %170 = arith.addf %168, %169 : vector<8x32xf32>
    %171 = math.tanh %170 : vector<8x32xf32>
    %172 = arith.mulf %165, %171 : vector<8x32xf32>
    %173 = vector.extract_strided_slice %148 {offsets = [0, 128], sizes = [8, 128], strides = [1, 1]} : vector<8x256xf32> to vector<8x128xf32>
    %174 = arith.addf %173, %154 : vector<8x128xf32>
    %175 = arith.truncf %172 : vector<8x32xf32> to vector<8x32xbf16>
    %c0_46 = arith.constant 0 : index
    %c0_47 = arith.constant 0 : index
    %176 = vector.load %arg6[%c0_46, %c0_47] : memref<32x128xbf16, #tpu.memory_space<vmem>>, vector<32x128xbf16>
    %cst_48 = arith.constant dense<0.000000e+00> : vector<8x128xf32>
    %177 = tpu.matmul %175, %176, %cst_48 {dimension_numbers = #tpu.dot_dimension_numbers<[1], [0], [0], [1], [0, 0, 1, 1], [], []>} : vector<8x32xbf16>, vector<32x128xbf16>, vector<8x128xf32> -> vector<8x128xf32>
    %178 = arith.addf %174, %177 : vector<8x128xf32>
    %179 = vector.extract_strided_slice %178 {offsets = [0, 0], sizes = [8, 96], strides = [1, 1]} : vector<8x128xf32> to vector<8x96xf32>
    %180 = arith.negf %179 : vector<8x96xf32>
    %181 = math.exp %180 : vector<8x96xf32>
    %cst_49 = arith.constant 1.000000e+00 : f32
    %182 = vector.broadcast %cst_49 : f32 to vector<8x96xf32>
    %183 = arith.addf %182, %181 : vector<8x96xf32>
    %184 = arith.divf %182, %183 : vector<8x96xf32>
    %185 = vector.extract_strided_slice %184 {offsets = [0, 0], sizes = [8, 32], strides = [1, 1]} : vector<8x96xf32> to vector<8x32xf32>
    %186 = vector.extract_strided_slice %184 {offsets = [0, 32], sizes = [8, 32], strides = [1, 1]} : vector<8x96xf32> to vector<8x32xf32>
    %187 = vector.extract_strided_slice %184 {offsets = [0, 64], sizes = [8, 32], strides = [1, 1]} : vector<8x96xf32> to vector<8x32xf32>
    %188 = vector.extract_strided_slice %178 {offsets = [0, 96], sizes = [8, 32], strides = [1, 1]} : vector<8x128xf32> to vector<8x32xf32>
    %189 = math.tanh %188 : vector<8x32xf32>
    %190 = arith.mulf %186, %145 : vector<8x32xf32>
    %191 = arith.mulf %185, %189 : vector<8x32xf32>
    %192 = arith.addf %190, %191 : vector<8x32xf32>
    %193 = math.tanh %192 : vector<8x32xf32>
    %194 = arith.mulf %187, %193 : vector<8x32xf32>
    %195 = vector.extract_strided_slice %5 {offsets = [32, 0], sizes = [8, 256], strides = [1, 1]} : vector<64x256xf32> to vector<8x256xf32>
    %196 = arith.truncf %172 : vector<8x32xf32> to vector<8x32xbf16>
    %c0_50 = arith.constant 0 : index
    %c0_51 = arith.constant 0 : index
    %197 = vector.load %arg4[%c0_50, %c0_51] : memref<32x128xbf16, #tpu.memory_space<vmem>>, vector<32x128xbf16>
    %cst_52 = arith.constant dense<0.000000e+00> : vector<8x128xf32>
    %198 = tpu.matmul %196, %197, %cst_52 {dimension_numbers = #tpu.dot_dimension_numbers<[1], [0], [0], [1], [0, 0, 1, 1], [], []>} : vector<8x32xbf16>, vector<32x128xbf16>, vector<8x128xf32> -> vector<8x128xf32>
    %199 = arith.truncf %194 : vector<8x32xf32> to vector<8x32xbf16>
    %c0_53 = arith.constant 0 : index
    %c0_54 = arith.constant 0 : index
    %200 = vector.load %arg5[%c0_53, %c0_54] : memref<32x128xbf16, #tpu.memory_space<vmem>>, vector<32x128xbf16>
    %cst_55 = arith.constant dense<0.000000e+00> : vector<8x128xf32>
    %201 = tpu.matmul %199, %200, %cst_55 {dimension_numbers = #tpu.dot_dimension_numbers<[1], [0], [0], [1], [0, 0, 1, 1], [], []>} : vector<8x32xbf16>, vector<32x128xbf16>, vector<8x128xf32> -> vector<8x128xf32>
    %202 = vector.extract_strided_slice %195 {offsets = [0, 0], sizes = [8, 128], strides = [1, 1]} : vector<8x256xf32> to vector<8x128xf32>
    %203 = arith.addf %202, %198 : vector<8x128xf32>
    %204 = vector.extract_strided_slice %203 {offsets = [0, 0], sizes = [8, 96], strides = [1, 1]} : vector<8x128xf32> to vector<8x96xf32>
    %205 = arith.negf %204 : vector<8x96xf32>
    %206 = math.exp %205 : vector<8x96xf32>
    %cst_56 = arith.constant 1.000000e+00 : f32
    %207 = vector.broadcast %cst_56 : f32 to vector<8x96xf32>
    %208 = arith.addf %207, %206 : vector<8x96xf32>
    %209 = arith.divf %207, %208 : vector<8x96xf32>
    %210 = vector.extract_strided_slice %209 {offsets = [0, 0], sizes = [8, 32], strides = [1, 1]} : vector<8x96xf32> to vector<8x32xf32>
    %211 = vector.extract_strided_slice %209 {offsets = [0, 32], sizes = [8, 32], strides = [1, 1]} : vector<8x96xf32> to vector<8x32xf32>
    %212 = vector.extract_strided_slice %209 {offsets = [0, 64], sizes = [8, 32], strides = [1, 1]} : vector<8x96xf32> to vector<8x32xf32>
    %213 = vector.extract_strided_slice %203 {offsets = [0, 96], sizes = [8, 32], strides = [1, 1]} : vector<8x128xf32> to vector<8x32xf32>
    %214 = math.tanh %213 : vector<8x32xf32>
    %215 = arith.mulf %211, %170 : vector<8x32xf32>
    %216 = arith.mulf %210, %214 : vector<8x32xf32>
    %217 = arith.addf %215, %216 : vector<8x32xf32>
    %218 = math.tanh %217 : vector<8x32xf32>
    %219 = arith.mulf %212, %218 : vector<8x32xf32>
    %220 = vector.extract_strided_slice %195 {offsets = [0, 128], sizes = [8, 128], strides = [1, 1]} : vector<8x256xf32> to vector<8x128xf32>
    %221 = arith.addf %220, %201 : vector<8x128xf32>
    %222 = arith.truncf %219 : vector<8x32xf32> to vector<8x32xbf16>
    %c0_57 = arith.constant 0 : index
    %c0_58 = arith.constant 0 : index
    %223 = vector.load %arg6[%c0_57, %c0_58] : memref<32x128xbf16, #tpu.memory_space<vmem>>, vector<32x128xbf16>
    %cst_59 = arith.constant dense<0.000000e+00> : vector<8x128xf32>
    %224 = tpu.matmul %222, %223, %cst_59 {dimension_numbers = #tpu.dot_dimension_numbers<[1], [0], [0], [1], [0, 0, 1, 1], [], []>} : vector<8x32xbf16>, vector<32x128xbf16>, vector<8x128xf32> -> vector<8x128xf32>
    %225 = arith.addf %221, %224 : vector<8x128xf32>
    %226 = vector.extract_strided_slice %225 {offsets = [0, 0], sizes = [8, 96], strides = [1, 1]} : vector<8x128xf32> to vector<8x96xf32>
    %227 = arith.negf %226 : vector<8x96xf32>
    %228 = math.exp %227 : vector<8x96xf32>
    %cst_60 = arith.constant 1.000000e+00 : f32
    %229 = vector.broadcast %cst_60 : f32 to vector<8x96xf32>
    %230 = arith.addf %229, %228 : vector<8x96xf32>
    %231 = arith.divf %229, %230 : vector<8x96xf32>
    %232 = vector.extract_strided_slice %231 {offsets = [0, 0], sizes = [8, 32], strides = [1, 1]} : vector<8x96xf32> to vector<8x32xf32>
    %233 = vector.extract_strided_slice %231 {offsets = [0, 32], sizes = [8, 32], strides = [1, 1]} : vector<8x96xf32> to vector<8x32xf32>
    %234 = vector.extract_strided_slice %231 {offsets = [0, 64], sizes = [8, 32], strides = [1, 1]} : vector<8x96xf32> to vector<8x32xf32>
    %235 = vector.extract_strided_slice %225 {offsets = [0, 96], sizes = [8, 32], strides = [1, 1]} : vector<8x128xf32> to vector<8x32xf32>
    %236 = math.tanh %235 : vector<8x32xf32>
    %237 = arith.mulf %233, %192 : vector<8x32xf32>
    %238 = arith.mulf %232, %236 : vector<8x32xf32>
    %239 = arith.addf %237, %238 : vector<8x32xf32>
    %240 = math.tanh %239 : vector<8x32xf32>
    %241 = arith.mulf %234, %240 : vector<8x32xf32>
    %242 = vector.extract_strided_slice %5 {offsets = [40, 0], sizes = [8, 256], strides = [1, 1]} : vector<64x256xf32> to vector<8x256xf32>
    %243 = arith.truncf %219 : vector<8x32xf32> to vector<8x32xbf16>
    %c0_61 = arith.constant 0 : index
    %c0_62 = arith.constant 0 : index
    %244 = vector.load %arg4[%c0_61, %c0_62] : memref<32x128xbf16, #tpu.memory_space<vmem>>, vector<32x128xbf16>
    %cst_63 = arith.constant dense<0.000000e+00> : vector<8x128xf32>
    %245 = tpu.matmul %243, %244, %cst_63 {dimension_numbers = #tpu.dot_dimension_numbers<[1], [0], [0], [1], [0, 0, 1, 1], [], []>} : vector<8x32xbf16>, vector<32x128xbf16>, vector<8x128xf32> -> vector<8x128xf32>
    %246 = arith.truncf %241 : vector<8x32xf32> to vector<8x32xbf16>
    %c0_64 = arith.constant 0 : index
    %c0_65 = arith.constant 0 : index
    %247 = vector.load %arg5[%c0_64, %c0_65] : memref<32x128xbf16, #tpu.memory_space<vmem>>, vector<32x128xbf16>
    %cst_66 = arith.constant dense<0.000000e+00> : vector<8x128xf32>
    %248 = tpu.matmul %246, %247, %cst_66 {dimension_numbers = #tpu.dot_dimension_numbers<[1], [0], [0], [1], [0, 0, 1, 1], [], []>} : vector<8x32xbf16>, vector<32x128xbf16>, vector<8x128xf32> -> vector<8x128xf32>
    %249 = vector.extract_strided_slice %242 {offsets = [0, 0], sizes = [8, 128], strides = [1, 1]} : vector<8x256xf32> to vector<8x128xf32>
    %250 = arith.addf %249, %245 : vector<8x128xf32>
    %251 = vector.extract_strided_slice %250 {offsets = [0, 0], sizes = [8, 96], strides = [1, 1]} : vector<8x128xf32> to vector<8x96xf32>
    %252 = arith.negf %251 : vector<8x96xf32>
    %253 = math.exp %252 : vector<8x96xf32>
    %cst_67 = arith.constant 1.000000e+00 : f32
    %254 = vector.broadcast %cst_67 : f32 to vector<8x96xf32>
    %255 = arith.addf %254, %253 : vector<8x96xf32>
    %256 = arith.divf %254, %255 : vector<8x96xf32>
    %257 = vector.extract_strided_slice %256 {offsets = [0, 0], sizes = [8, 32], strides = [1, 1]} : vector<8x96xf32> to vector<8x32xf32>
    %258 = vector.extract_strided_slice %256 {offsets = [0, 32], sizes = [8, 32], strides = [1, 1]} : vector<8x96xf32> to vector<8x32xf32>
    %259 = vector.extract_strided_slice %256 {offsets = [0, 64], sizes = [8, 32], strides = [1, 1]} : vector<8x96xf32> to vector<8x32xf32>
    %260 = vector.extract_strided_slice %250 {offsets = [0, 96], sizes = [8, 32], strides = [1, 1]} : vector<8x128xf32> to vector<8x32xf32>
    %261 = math.tanh %260 : vector<8x32xf32>
    %262 = arith.mulf %258, %217 : vector<8x32xf32>
    %263 = arith.mulf %257, %261 : vector<8x32xf32>
    %264 = arith.addf %262, %263 : vector<8x32xf32>
    %265 = math.tanh %264 : vector<8x32xf32>
    %266 = arith.mulf %259, %265 : vector<8x32xf32>
    %267 = vector.extract_strided_slice %242 {offsets = [0, 128], sizes = [8, 128], strides = [1, 1]} : vector<8x256xf32> to vector<8x128xf32>
    %268 = arith.addf %267, %248 : vector<8x128xf32>
    %269 = arith.truncf %266 : vector<8x32xf32> to vector<8x32xbf16>
    %c0_68 = arith.constant 0 : index
    %c0_69 = arith.constant 0 : index
    %270 = vector.load %arg6[%c0_68, %c0_69] : memref<32x128xbf16, #tpu.memory_space<vmem>>, vector<32x128xbf16>
    %cst_70 = arith.constant dense<0.000000e+00> : vector<8x128xf32>
    %271 = tpu.matmul %269, %270, %cst_70 {dimension_numbers = #tpu.dot_dimension_numbers<[1], [0], [0], [1], [0, 0, 1, 1], [], []>} : vector<8x32xbf16>, vector<32x128xbf16>, vector<8x128xf32> -> vector<8x128xf32>
    %272 = arith.addf %268, %271 : vector<8x128xf32>
    %273 = vector.extract_strided_slice %272 {offsets = [0, 0], sizes = [8, 96], strides = [1, 1]} : vector<8x128xf32> to vector<8x96xf32>
    %274 = arith.negf %273 : vector<8x96xf32>
    %275 = math.exp %274 : vector<8x96xf32>
    %cst_71 = arith.constant 1.000000e+00 : f32
    %276 = vector.broadcast %cst_71 : f32 to vector<8x96xf32>
    %277 = arith.addf %276, %275 : vector<8x96xf32>
    %278 = arith.divf %276, %277 : vector<8x96xf32>
    %279 = vector.extract_strided_slice %278 {offsets = [0, 0], sizes = [8, 32], strides = [1, 1]} : vector<8x96xf32> to vector<8x32xf32>
    %280 = vector.extract_strided_slice %278 {offsets = [0, 32], sizes = [8, 32], strides = [1, 1]} : vector<8x96xf32> to vector<8x32xf32>
    %281 = vector.extract_strided_slice %278 {offsets = [0, 64], sizes = [8, 32], strides = [1, 1]} : vector<8x96xf32> to vector<8x32xf32>
    %282 = vector.extract_strided_slice %272 {offsets = [0, 96], sizes = [8, 32], strides = [1, 1]} : vector<8x128xf32> to vector<8x32xf32>
    %283 = math.tanh %282 : vector<8x32xf32>
    %284 = arith.mulf %280, %239 : vector<8x32xf32>
    %285 = arith.mulf %279, %283 : vector<8x32xf32>
    %286 = arith.addf %284, %285 : vector<8x32xf32>
    %287 = math.tanh %286 : vector<8x32xf32>
    %288 = arith.mulf %281, %287 : vector<8x32xf32>
    %289 = vector.extract_strided_slice %5 {offsets = [48, 0], sizes = [8, 256], strides = [1, 1]} : vector<64x256xf32> to vector<8x256xf32>
    %290 = arith.truncf %266 : vector<8x32xf32> to vector<8x32xbf16>
    %c0_72 = arith.constant 0 : index
    %c0_73 = arith.constant 0 : index
    %291 = vector.load %arg4[%c0_72, %c0_73] : memref<32x128xbf16, #tpu.memory_space<vmem>>, vector<32x128xbf16>
    %cst_74 = arith.constant dense<0.000000e+00> : vector<8x128xf32>
    %292 = tpu.matmul %290, %291, %cst_74 {dimension_numbers = #tpu.dot_dimension_numbers<[1], [0], [0], [1], [0, 0, 1, 1], [], []>} : vector<8x32xbf16>, vector<32x128xbf16>, vector<8x128xf32> -> vector<8x128xf32>
    %293 = arith.truncf %288 : vector<8x32xf32> to vector<8x32xbf16>
    %c0_75 = arith.constant 0 : index
    %c0_76 = arith.constant 0 : index
    %294 = vector.load %arg5[%c0_75, %c0_76] : memref<32x128xbf16, #tpu.memory_space<vmem>>, vector<32x128xbf16>
    %cst_77 = arith.constant dense<0.000000e+00> : vector<8x128xf32>
    %295 = tpu.matmul %293, %294, %cst_77 {dimension_numbers = #tpu.dot_dimension_numbers<[1], [0], [0], [1], [0, 0, 1, 1], [], []>} : vector<8x32xbf16>, vector<32x128xbf16>, vector<8x128xf32> -> vector<8x128xf32>
    %296 = vector.extract_strided_slice %289 {offsets = [0, 0], sizes = [8, 128], strides = [1, 1]} : vector<8x256xf32> to vector<8x128xf32>
    %297 = arith.addf %296, %292 : vector<8x128xf32>
    %298 = vector.extract_strided_slice %297 {offsets = [0, 0], sizes = [8, 96], strides = [1, 1]} : vector<8x128xf32> to vector<8x96xf32>
    %299 = arith.negf %298 : vector<8x96xf32>
    %300 = math.exp %299 : vector<8x96xf32>
    %cst_78 = arith.constant 1.000000e+00 : f32
    %301 = vector.broadcast %cst_78 : f32 to vector<8x96xf32>
    %302 = arith.addf %301, %300 : vector<8x96xf32>
    %303 = arith.divf %301, %302 : vector<8x96xf32>
    %304 = vector.extract_strided_slice %303 {offsets = [0, 0], sizes = [8, 32], strides = [1, 1]} : vector<8x96xf32> to vector<8x32xf32>
    %305 = vector.extract_strided_slice %303 {offsets = [0, 32], sizes = [8, 32], strides = [1, 1]} : vector<8x96xf32> to vector<8x32xf32>
    %306 = vector.extract_strided_slice %303 {offsets = [0, 64], sizes = [8, 32], strides = [1, 1]} : vector<8x96xf32> to vector<8x32xf32>
    %307 = vector.extract_strided_slice %297 {offsets = [0, 96], sizes = [8, 32], strides = [1, 1]} : vector<8x128xf32> to vector<8x32xf32>
    %308 = math.tanh %307 : vector<8x32xf32>
    %309 = arith.mulf %305, %264 : vector<8x32xf32>
    %310 = arith.mulf %304, %308 : vector<8x32xf32>
    %311 = arith.addf %309, %310 : vector<8x32xf32>
    %312 = math.tanh %311 : vector<8x32xf32>
    %313 = arith.mulf %306, %312 : vector<8x32xf32>
    %314 = vector.extract_strided_slice %289 {offsets = [0, 128], sizes = [8, 128], strides = [1, 1]} : vector<8x256xf32> to vector<8x128xf32>
    %315 = arith.addf %314, %295 : vector<8x128xf32>
    %316 = arith.truncf %313 : vector<8x32xf32> to vector<8x32xbf16>
    %c0_79 = arith.constant 0 : index
    %c0_80 = arith.constant 0 : index
    %317 = vector.load %arg6[%c0_79, %c0_80] : memref<32x128xbf16, #tpu.memory_space<vmem>>, vector<32x128xbf16>
    %cst_81 = arith.constant dense<0.000000e+00> : vector<8x128xf32>
    %318 = tpu.matmul %316, %317, %cst_81 {dimension_numbers = #tpu.dot_dimension_numbers<[1], [0], [0], [1], [0, 0, 1, 1], [], []>} : vector<8x32xbf16>, vector<32x128xbf16>, vector<8x128xf32> -> vector<8x128xf32>
    %319 = arith.addf %315, %318 : vector<8x128xf32>
    %320 = vector.extract_strided_slice %319 {offsets = [0, 0], sizes = [8, 96], strides = [1, 1]} : vector<8x128xf32> to vector<8x96xf32>
    %321 = arith.negf %320 : vector<8x96xf32>
    %322 = math.exp %321 : vector<8x96xf32>
    %cst_82 = arith.constant 1.000000e+00 : f32
    %323 = vector.broadcast %cst_82 : f32 to vector<8x96xf32>
    %324 = arith.addf %323, %322 : vector<8x96xf32>
    %325 = arith.divf %323, %324 : vector<8x96xf32>
    %326 = vector.extract_strided_slice %325 {offsets = [0, 0], sizes = [8, 32], strides = [1, 1]} : vector<8x96xf32> to vector<8x32xf32>
    %327 = vector.extract_strided_slice %325 {offsets = [0, 32], sizes = [8, 32], strides = [1, 1]} : vector<8x96xf32> to vector<8x32xf32>
    %328 = vector.extract_strided_slice %325 {offsets = [0, 64], sizes = [8, 32], strides = [1, 1]} : vector<8x96xf32> to vector<8x32xf32>
    %329 = vector.extract_strided_slice %319 {offsets = [0, 96], sizes = [8, 32], strides = [1, 1]} : vector<8x128xf32> to vector<8x32xf32>
    %330 = math.tanh %329 : vector<8x32xf32>
    %331 = arith.mulf %327, %286 : vector<8x32xf32>
    %332 = arith.mulf %326, %330 : vector<8x32xf32>
    %333 = arith.addf %331, %332 : vector<8x32xf32>
    %334 = math.tanh %333 : vector<8x32xf32>
    %335 = arith.mulf %328, %334 : vector<8x32xf32>
    %336 = vector.extract_strided_slice %5 {offsets = [56, 0], sizes = [8, 256], strides = [1, 1]} : vector<64x256xf32> to vector<8x256xf32>
    %337 = arith.truncf %313 : vector<8x32xf32> to vector<8x32xbf16>
    %c0_83 = arith.constant 0 : index
    %c0_84 = arith.constant 0 : index
    %338 = vector.load %arg4[%c0_83, %c0_84] : memref<32x128xbf16, #tpu.memory_space<vmem>>, vector<32x128xbf16>
    %cst_85 = arith.constant dense<0.000000e+00> : vector<8x128xf32>
    %339 = tpu.matmul %337, %338, %cst_85 {dimension_numbers = #tpu.dot_dimension_numbers<[1], [0], [0], [1], [0, 0, 1, 1], [], []>} : vector<8x32xbf16>, vector<32x128xbf16>, vector<8x128xf32> -> vector<8x128xf32>
    %340 = arith.truncf %335 : vector<8x32xf32> to vector<8x32xbf16>
    %c0_86 = arith.constant 0 : index
    %c0_87 = arith.constant 0 : index
    %341 = vector.load %arg5[%c0_86, %c0_87] : memref<32x128xbf16, #tpu.memory_space<vmem>>, vector<32x128xbf16>
    %cst_88 = arith.constant dense<0.000000e+00> : vector<8x128xf32>
    %342 = tpu.matmul %340, %341, %cst_88 {dimension_numbers = #tpu.dot_dimension_numbers<[1], [0], [0], [1], [0, 0, 1, 1], [], []>} : vector<8x32xbf16>, vector<32x128xbf16>, vector<8x128xf32> -> vector<8x128xf32>
    %343 = vector.extract_strided_slice %336 {offsets = [0, 0], sizes = [8, 128], strides = [1, 1]} : vector<8x256xf32> to vector<8x128xf32>
    %344 = arith.addf %343, %339 : vector<8x128xf32>
    %345 = vector.extract_strided_slice %344 {offsets = [0, 0], sizes = [8, 96], strides = [1, 1]} : vector<8x128xf32> to vector<8x96xf32>
    %346 = arith.negf %345 : vector<8x96xf32>
    %347 = math.exp %346 : vector<8x96xf32>
    %cst_89 = arith.constant 1.000000e+00 : f32
    %348 = vector.broadcast %cst_89 : f32 to vector<8x96xf32>
    %349 = arith.addf %348, %347 : vector<8x96xf32>
    %350 = arith.divf %348, %349 : vector<8x96xf32>
    %351 = vector.extract_strided_slice %350 {offsets = [0, 0], sizes = [8, 32], strides = [1, 1]} : vector<8x96xf32> to vector<8x32xf32>
    %352 = vector.extract_strided_slice %350 {offsets = [0, 32], sizes = [8, 32], strides = [1, 1]} : vector<8x96xf32> to vector<8x32xf32>
    %353 = vector.extract_strided_slice %350 {offsets = [0, 64], sizes = [8, 32], strides = [1, 1]} : vector<8x96xf32> to vector<8x32xf32>
    %354 = vector.extract_strided_slice %344 {offsets = [0, 96], sizes = [8, 32], strides = [1, 1]} : vector<8x128xf32> to vector<8x32xf32>
    %355 = math.tanh %354 : vector<8x32xf32>
    %356 = arith.mulf %352, %311 : vector<8x32xf32>
    %357 = arith.mulf %351, %355 : vector<8x32xf32>
    %358 = arith.addf %356, %357 : vector<8x32xf32>
    %359 = math.tanh %358 : vector<8x32xf32>
    %360 = arith.mulf %353, %359 : vector<8x32xf32>
    %361 = vector.extract_strided_slice %336 {offsets = [0, 128], sizes = [8, 128], strides = [1, 1]} : vector<8x256xf32> to vector<8x128xf32>
    %362 = arith.addf %361, %342 : vector<8x128xf32>
    %363 = arith.truncf %360 : vector<8x32xf32> to vector<8x32xbf16>
    %c0_90 = arith.constant 0 : index
    %c0_91 = arith.constant 0 : index
    %364 = vector.load %arg6[%c0_90, %c0_91] : memref<32x128xbf16, #tpu.memory_space<vmem>>, vector<32x128xbf16>
    %cst_92 = arith.constant dense<0.000000e+00> : vector<8x128xf32>
    %365 = tpu.matmul %363, %364, %cst_92 {dimension_numbers = #tpu.dot_dimension_numbers<[1], [0], [0], [1], [0, 0, 1, 1], [], []>} : vector<8x32xbf16>, vector<32x128xbf16>, vector<8x128xf32> -> vector<8x128xf32>
    %366 = arith.addf %362, %365 : vector<8x128xf32>
    %367 = vector.extract_strided_slice %366 {offsets = [0, 0], sizes = [8, 96], strides = [1, 1]} : vector<8x128xf32> to vector<8x96xf32>
    %368 = arith.negf %367 : vector<8x96xf32>
    %369 = math.exp %368 : vector<8x96xf32>
    %cst_93 = arith.constant 1.000000e+00 : f32
    %370 = vector.broadcast %cst_93 : f32 to vector<8x96xf32>
    %371 = arith.addf %370, %369 : vector<8x96xf32>
    %372 = arith.divf %370, %371 : vector<8x96xf32>
    %373 = vector.extract_strided_slice %372 {offsets = [0, 0], sizes = [8, 32], strides = [1, 1]} : vector<8x96xf32> to vector<8x32xf32>
    %374 = vector.extract_strided_slice %372 {offsets = [0, 32], sizes = [8, 32], strides = [1, 1]} : vector<8x96xf32> to vector<8x32xf32>
    %375 = vector.extract_strided_slice %372 {offsets = [0, 64], sizes = [8, 32], strides = [1, 1]} : vector<8x96xf32> to vector<8x32xf32>
    %376 = vector.extract_strided_slice %366 {offsets = [0, 96], sizes = [8, 32], strides = [1, 1]} : vector<8x128xf32> to vector<8x32xf32>
    %377 = math.tanh %376 : vector<8x32xf32>
    %378 = arith.mulf %374, %333 : vector<8x32xf32>
    %379 = arith.mulf %373, %377 : vector<8x32xf32>
    %380 = arith.addf %378, %379 : vector<8x32xf32>
    %381 = math.tanh %380 : vector<8x32xf32>
    %382 = arith.mulf %375, %381 : vector<8x32xf32>
    %383 = arith.truncf %382 : vector<8x32xf32> to vector<8x32xbf16>
    %c0_94 = arith.constant 0 : index
    %c0_95 = arith.constant 0 : index
    %384 = vector.load %arg7[%c0_94, %c0_95] : memref<32x128xbf16, #tpu.memory_space<vmem>>, vector<32x128xbf16>
    %cst_96 = arith.constant dense<0.000000e+00> : vector<8x128xf32>
    %385 = tpu.matmul %383, %384, %cst_96 {dimension_numbers = #tpu.dot_dimension_numbers<[1], [0], [0], [1], [0, 0, 1, 1], [], []>} : vector<8x32xbf16>, vector<32x128xbf16>, vector<8x128xf32> -> vector<8x128xf32>
    %c0_97 = arith.constant 0 : index
    %c0_98 = arith.constant 0 : index
    %386 = vector.load %arg8[%c0_97, %c0_98] : memref<1x128xf32, #tpu.memory_space<vmem>>, vector<1x128xf32>
    %387 = vector.broadcast %386 : vector<1x128xf32> to vector<8x128xf32>
    %388 = arith.addf %385, %387 : vector<8x128xf32>
    %c0_99 = arith.constant 0 : index
    %c0_100 = arith.constant 0 : index
    %389 = vector.load %arg9[%c0_99, %c0_100] : memref<8x128xf32, #tpu.memory_space<vmem>>, vector<8x128xf32>
    tpu.vector_store %arg9[%c0_99, %c0_100], %388 {strides = array<i32>} : memref<8x128xf32, #tpu.memory_space<vmem>>, vector<8x128xf32>,
    return
  }
  func.func @transform_0(%arg0: i32) -> (i32, i32) {
    %c0_i32 = arith.constant 0 : i32
    %c0_i32_0 = arith.constant 0 : i32
    %c0_i32_1 = arith.constant 0 : i32
    return %c0_i32, %c0_i32_0 : i32, i32
  }
  func.func @transform_1(%arg0: i32) -> (i32, i32) {
    %c0_i32 = arith.constant 0 : i32
    %c0_i32_0 = arith.constant 0 : i32
    %c0_i32_1 = arith.constant 0 : i32
    return %c0_i32, %c0_i32_0 : i32, i32
  }
  func.func @transform_2(%arg0: i32) -> (i32, i32) {
    %c0_i32 = arith.constant 0 : i32
    %c0_i32_0 = arith.constant 0 : i32
    %c0_i32_1 = arith.constant 0 : i32
    return %c0_i32, %c0_i32_0 : i32, i32
  }
  func.func @transform_3(%arg0: i32) -> (i32, i32) {
    %c0_i32 = arith.constant 0 : i32
    %c0_i32_0 = arith.constant 0 : i32
    %c0_i32_1 = arith.constant 0 : i32
    return %c0_i32, %c0_i32_0 : i32, i32
  }
  func.func @transform_4(%arg0: i32) -> (i32, i32) {
    %c0_i32 = arith.constant 0 : i32
    %c0_i32_0 = arith.constant 0 : i32
    %c0_i32_1 = arith.constant 0 : i32
    return %c0_i32, %c0_i32_0 : i32, i32
  }
  func.func @transform_5(%arg0: i32) -> (i32, i32) {
    %c0_i32 = arith.constant 0 : i32
    %c0_i32_0 = arith.constant 0 : i32
    %c0_i32_1 = arith.constant 0 : i32
    return %c0_i32, %c0_i32_0 : i32, i32
  }
  func.func @transform_6(%arg0: i32) -> (i32, i32) {
    %c0_i32 = arith.constant 0 : i32
    %c0_i32_0 = arith.constant 0 : i32
    %c0_i32_1 = arith.constant 0 : i32
    return %c0_i32, %c0_i32_0 : i32, i32
  }
  func.func @transform_7(%arg0: i32) -> (i32, i32) {
    %c0_i32 = arith.constant 0 : i32
    %c0_i32_0 = arith.constant 0 : i32
    %c0_i32_1 = arith.constant 0 : i32
    return %c0_i32, %c0_i32_0 : i32, i32
  }
  func.func @transform_8(%arg0: i32) -> (i32, i32) {
    %c0_i32 = arith.constant 0 : i32
    %c0_i32_0 = arith.constant 0 : i32
    %c0_i32_1 = arith.constant 0 : i32
    return %c0_i32, %c0_i32_0 : i32, i32
  }
}

</mosaic_0001>

<llo_original>
// kernel: tpu_custom_call.1
$region0: #{tpu_custom_call.1}
  #allocation0 [shape = 'u32[]', space=smem, size = 0x4, offset = 0x4, fixed_abs, tag = 'smem constant byte address 0x4 - core index']
  #allocation1 [shape = 'u32[72,128]{1,0:T(1,128)}', space=vmem, size = 0x9000, scoped, tag = 'internal scratch']
  %s0 = inlined_call_operand.vmem [shape: bf16[64,8], index: 0, kind: input, shape index: {}]
  %s1 = inlined_call_operand.hbm [shape: bf16[8,256], index: 1, kind: input, shape index: {}]
  %s2 = inlined_call_operand.vmem [shape: f32[1,256], index: 2, kind: input, shape index: {}]
  %s3 = inlined_call_operand.vmem [shape: bf16[32,128], index: 3, kind: input, shape index: {}]
  %s4 = inlined_call_operand.vmem [shape: bf16[32,128], index: 4, kind: input, shape index: {}]
  %s5 = inlined_call_operand.hbm [shape: bf16[32,128], index: 5, kind: input, shape index: {}]
  %s6 = inlined_call_operand.hbm [shape: bf16[32,128], index: 6, kind: input, shape index: {}]
  %s7 = inlined_call_operand.vmem [shape: f32[1,128], index: 7, kind: input, shape index: {}]
  %s8 = inlined_call_operand.hbm [shape: f32[8,128], index: 8, kind: output, shape index: {}]
  %s9 = sld [smem:[#allocation0]]
  $region54: #{tpu_custom_call.1} parent=0
    _
  %s11 = ssub.s32 1, %s9
  %s12 = scalar_select 0, %s11, %s9
  $region1: #{tpu_custom_call.1} parent=0
    #allocation2 [shape = 'u8[4096]{0}', space=vmem, size = 0x1000, scoped, tag = 'input window, operand 1, single buffered']
    #allocation3 [shape = 's32[1]{0}', space=sflag, size = 0x4, scoped, tag = 'scoped memory for tpu_custom_call.1']
    #allocation4 [shape = 's32[1]{0}', space=sflag, size = 0x4, scoped, tag = 'scoped memory for tpu_custom_call.1']
    #allocation5 [shape = 'u8[8192]{0}', space=vmem, size = 0x2000, scoped, tag = 'input window, operand 5, single buffered']
    #allocation6 [shape = 's32[1]{0}', space=sflag, size = 0x4, scoped, tag = 'scoped memory for tpu_custom_call.1']
    #allocation7 [shape = 'u8[8192]{0}', space=vmem, size = 0x2000, scoped, tag = 'input window, operand 6, single buffered']
    #allocation8 [shape = 'u8[4096]{0}', space=vmem, size = 0x1000, scoped, tag = 'output window, operand 0, single buffered']
    %13 = vsyncpa [#allocation3], 0
    %14 = vsyncpa [#allocation6], 0
    %15 = vsyncpa [#allocation4], 0
    // Predicated region
    $region2: #{tpu_custom_call.1} parent=1 // pred_check
      _
    $region3: #{tpu_custom_call.1} parent=1 // pred_check_branch
      %17 = sbr.rel (0) target = $region5
    $region4: #{tpu_custom_call.1} parent=1 // pred_region
      _
    $region5: #{tpu_custom_call.1} parent=1 // pred_fallthru
      _
    // Predicated region
    $region6: #{tpu_custom_call.1} parent=1 // pred_check
      _
    $region7: #{tpu_custom_call.1} parent=1 // pred_check_branch
      %19 = sbr.rel (0) target = $region9
    $region8: #{tpu_custom_call.1} parent=1 // pred_region
      %21 = vsyncadd [#allocation3], 0
      %s23 = sshll.u32 %s1, 4
      %s24 = int_to_ptr.hbm [resolvable:$true] %s23
      %s25 = sshll.u32 [#allocation2], 4
      %s26 = int_to_ptr.vmem [resolvable:$true] %s25
      %28 = dma.hbm_to_vmem [thread:$0]  %s24, 128, %s26, [#allocation3]
    $region9: #{tpu_custom_call.1} parent=1 // pred_fallthru
      _
    // Predicated region
    $region10: #{tpu_custom_call.1} parent=1 // pred_check
      _
    $region11: #{tpu_custom_call.1} parent=1 // pred_check_branch
      %30 = sbr.rel (0) target = $region13
    $region12: #{tpu_custom_call.1} parent=1 // pred_region
      _
    $region13: #{tpu_custom_call.1} parent=1 // pred_fallthru
      _
    // Predicated region
    $region14: #{tpu_custom_call.1} parent=1 // pred_check
      _
    $region15: #{tpu_custom_call.1} parent=1 // pred_check_branch
      %32 = sbr.rel (0) target = $region17
    $region16: #{tpu_custom_call.1} parent=1 // pred_region
      _
    $region17: #{tpu_custom_call.1} parent=1 // pred_fallthru
      _
    // Predicated region
    $region18: #{tpu_custom_call.1} parent=1 // pred_check
      _
    $region19: #{tpu_custom_call.1} parent=1 // pred_check_branch
      %34 = sbr.rel (0) target = $region21
    $region20: #{tpu_custom_call.1} parent=1 // pred_region
      _
    $region21: #{tpu_custom_call.1} parent=1 // pred_fallthru
      _
    // Predicated region
    $region22: #{tpu_custom_call.1} parent=1 // pred_check
      _
    $region23: #{tpu_custom_call.1} parent=1 // pred_check_branch
      %36 = sbr.rel (0) target = $region25
    $region24: #{tpu_custom_call.1} parent=1 // pred_region
      %38 = vsyncadd [#allocation6], 0
      %s39 = sshll.u32 %s5, 4
      %s40 = int_to_ptr.hbm [resolvable:$true] %s39
      %s41 = sshll.u32 [#allocation5], 4
      %s42 = int_to_ptr.vmem [resolvable:$true] %s41
      %47 = dma.hbm_to_vmem [thread:$0]  %s40, 256, %s42, [#allocation6], 64, 64, 4
    $region25: #{tpu_custom_call.1} parent=1 // pred_fallthru
      _
    // Predicated region
    $region26: #{tpu_custom_call.1} parent=1 // pred_check
      _
    $region27: #{tpu_custom_call.1} parent=1 // pred_check_branch
      %49 = sbr.rel (0) target = $region29
    $region28: #{tpu_custom_call.1} parent=1 // pred_region
      %51 = vsyncadd [#allocation6], 0
      %s52 = sshll.u32 %s6, 4
      %s53 = int_to_ptr.hbm [resolvable:$true] %s52
      %s54 = sshll.u32 [#allocation7], 4
      %s55 = int_to_ptr.vmem [resolvable:$true] %s54
      %60 = dma.hbm_to_vmem [thread:$0]  %s53, 256, %s55, [#allocation6], 64, 64, 4
    $region29: #{tpu_custom_call.1} parent=1 // pred_fallthru
      _
    // Predicated region
    $region30: #{tpu_custom_call.1} parent=1 // pred_check
      _
    $region31: #{tpu_custom_call.1} parent=1 // pred_check_branch
      %62 = sbr.rel (0) target = $region33
    $region32: #{tpu_custom_call.1} parent=1 // pred_region
      _
    $region33: #{tpu_custom_call.1} parent=1 // pred_fallthru
      _
    // Predicated region
    $region34: #{tpu_custom_call.1} parent=1 // pred_check
      _
    $region35: #{tpu_custom_call.1} parent=1 // pred_check_branch
      %64 = sbr.rel (0) target = $region37
    $region36: #{tpu_custom_call.1} parent=1 // pred_region
      %66 = dma.done [#allocation3], 128
    $region37: #{tpu_custom_call.1} parent=1 // pred_fallthru
      _
    // Predicated region
    $region38: #{tpu_custom_call.1} parent=1 // pred_check
      _
    $region39: #{tpu_custom_call.1} parent=1 // pred_check_branch
      %68 = sbr.rel (0) target = $region41
    $region40: #{tpu_custom_call.1} parent=1 // pred_region
      %70 = dma.done [#allocation6], 256
    $region41: #{tpu_custom_call.1} parent=1 // pred_fallthru
      _
    // Predicated region
    $region42: #{tpu_custom_call.1} parent=1 // pred_check
      _
    $region43: #{tpu_custom_call.1} parent=1 // pred_check_branch
      %72 = sbr.rel (0) target = $region45
    $region44: #{tpu_custom_call.1} parent=1 // pred_region
      %74 = dma.done [#allocation6], 256
    $region45: #{tpu_custom_call.1} parent=1 // pred_fallthru
      _
    %v76 = vld [vmem:[%s0] sm:$0xf]
    %v77 = vld [vmem:[%s0 + $0x4] sm:$0xf]
    %v78 = vld [vmem:[%s0 + $0x8] sm:$0xf]
    %v79 = vld [vmem:[%s0 + $0xc] sm:$0xf]
    %v80 = vld [vmem:[%s0 + $0x10] sm:$0xf]
    %v81 = vld [vmem:[%s0 + $0x14] sm:$0xf]
    %v82 = vld [vmem:[%s0 + $0x18] sm:$0xf]
    %v83 = vld [vmem:[%s0 + $0x1c] sm:$0xf]
    %v84 = vld [vmem:[#allocation2] sm:$0xff]
    %v85 = vld [vmem:[%s2] sm:$0x3]
    %v87 = vperm.slane %v85, 0
    %v88 = vperm.slane %v85, 1
    %v99 = vunpack.c.l.b16 %v76
    %v100 = vunpack.c.l.b16 %v77
    %v101 = vunpack.c.l.b16 %v78
    %v102 = vunpack.c.l.b16 %v79
    %v103 = vunpack.c.l.b16 %v80
    %v104 = vunpack.c.l.b16 %v81
    %v105 = vunpack.c.l.b16 %v82
    %v106 = vunpack.c.l.b16 %v83
    %v107 = vpack.c.b16 %v100, %v99
    %v108 = vpack.c.b16 %v102, %v101
    %v109 = vpack.c.b16 %v104, %v103
    %v110 = vpack.c.b16 %v106, %v105
    %v112 = vunpack.c.l.b16 %v84
    %v113 = vunpack.c.h.b16 %v84
    %v114 = vpack.c.b16 %v112, %v112
    %v115 = vpack.c.b16 %v113, %v113
    %vm116 = vcmask 64512
    %v118 = vsel %vm116, %v107, 0
    %v121 = vsel %vm116, %v108, 0
    %v124 = vsel %vm116, %v109, 0
    %v127 = vsel %vm116, %v110, 0
    %vm129 = vcmask 1043456
    %v131 = vsel %vm129, %v114, 0
    %v134 = vsel %vm129, %v115, 0
    %136 = vmatpush.bf16.msra.mxu0 0
    %137 = vmatpush.bf16.msra.mxu0 0
    %138 = vmatpush.bf16.msra.mxu0 0
    %139 = vmatpush.bf16.msra.mxu0 0
    %140 = vmatpush.bf16.msra.mxu0 0
    %141 = vmatpush.bf16.msra.mxu0 0
    %142 = vmatpush.bf16.msra.mxu0 0
    %143 = vmatpush.bf16.msra.mxu0 %v131
    %144 = vmatmul.bf16.gmra.mxu0 %v118
    %v145 = vpop.f32.mrf.mxu0
    %v146 = vadd.f32 %v87, %v145
    %v147 = vpop.f32.mrf.mxu0
    %v148 = vadd.f32 %v87, %v147
    %149 = vmatmul.bf16.gmra.mxu0 %v121
    %v150 = vpop.f32.mrf.mxu0
    %v151 = vadd.f32 %v87, %v150
    %v152 = vpop.f32.mrf.mxu0
    %v153 = vadd.f32 %v87, %v152
    %154 = vmatmul.bf16.gmra.mxu0 %v124
    %v155 = vpop.f32.mrf.mxu0
    %v156 = vadd.f32 %v87, %v155
    %v157 = vpop.f32.mrf.mxu0
    %v158 = vadd.f32 %v87, %v157
    %159 = vmatmul.bf16.gmra.mxu0 %v127
    %v160 = vpop.f32.mrf.mxu0
    %v161 = vadd.f32 %v87, %v160
    %v162 = vpop.f32.mrf.mxu0
    %v163 = vadd.f32 %v87, %v162
    %164 = vdwg.mxu0
    %165 = vmatpush.bf16.msra.mxu0 0
    %166 = vmatpush.bf16.msra.mxu0 0
    %167 = vmatpush.bf16.msra.mxu0 0
    %168 = vmatpush.bf16.msra.mxu0 0
    %169 = vmatpush.bf16.msra.mxu0 0
    %170 = vmatpush.bf16.msra.mxu0 0
    %171 = vmatpush.bf16.msra.mxu0 0
    %172 = vmatpush.bf16.msra.mxu0 %v134
    %173 = vmatmul.bf16.gmra.mxu0 %v118
    %v174 = vpop.f32.mrf.mxu0
    %v175 = vadd.f32 %v88, %v174
    %v176 = vpop.f32.mrf.mxu0
    %v177 = vadd.f32 %v88, %v176
    %178 = vmatmul.bf16.gmra.mxu0 %v121
    %v179 = vpop.f32.mrf.mxu0
    %v180 = vadd.f32 %v88, %v179
    %v181 = vpop.f32.mrf.mxu0
    %v182 = vadd.f32 %v88, %v181
    %183 = vmatmul.bf16.gmra.mxu0 %v124
    %v184 = vpop.f32.mrf.mxu0
    %v185 = vadd.f32 %v88, %v184
    %v186 = vpop.f32.mrf.mxu0
    %v187 = vadd.f32 %v88, %v186
    %188 = vmatmul.bf16.gmra.mxu0 %v127
    %v189 = vpop.f32.mrf.mxu0
    %v190 = vadd.f32 %v88, %v189
    %v191 = vpop.f32.mrf.mxu0
    %v192 = vadd.f32 %v88, %v191
    %193 = vdwg.mxu0
    %v194 = vld [vmem:[%s3] sm:$0xf]
    %v195 = vld [vmem:[%s3 + $0x4] sm:$0xf]
    %v196 = vld [vmem:[%s3 + $0x8] sm:$0xf]
    %v197 = vld [vmem:[%s3 + $0xc] sm:$0xf]
    %v202 = vunpack.c.l.b16 %v194
    %v203 = vunpack.c.l.b16 %v195
    %v204 = vunpack.c.l.b16 %v196
    %v205 = vunpack.c.l.b16 %v197
    %v206 = vpack.c.b16 %v203, %v202
    %v207 = vpack.c.b16 %v205, %v204
    %vm210 = vcmask 261120
    %v212 = vsel %vm210, 0, 0
    %214 = vmatpush.bf16.msra.mxu0 0
    %215 = vmatpush.bf16.msra.mxu0 0
    %216 = vmatpush.bf16.msra.mxu0 0
    %217 = vmatpush.bf16.msra.mxu0 0
    %218 = vmatpush.bf16.msra.mxu0 0
    %219 = vmatpush.bf16.msra.mxu0 0
    %220 = vmatpush.bf16.msra.mxu0 %v207
    %221 = vmatpush.bf16.msra.mxu0 %v206
    %222 = vmatmul.bf16.gmra.mxu0 %v212
    %v223 = vpop.f32.mrf.mxu0
    %v224 = vadd.f32 0.0, %v223
    %v225 = vpop.f32.mrf.mxu0
    %226 = vdwg.mxu0
    %v227 = vld [vmem:[%s4] sm:$0xf]
    %v228 = vld [vmem:[%s4 + $0x4] sm:$0xf]
    %v229 = vld [vmem:[%s4 + $0x8] sm:$0xf]
    %v230 = vld [vmem:[%s4 + $0xc] sm:$0xf]
    %v235 = vunpack.c.l.b16 %v227
    %v236 = vunpack.c.l.b16 %v228
    %v237 = vunpack.c.l.b16 %v229
    %v238 = vunpack.c.l.b16 %v230
    %v239 = vpack.c.b16 %v236, %v235
    %v240 = vpack.c.b16 %v238, %v237
    %243 = vmatpush.bf16.msra.mxu0 0
    %244 = vmatpush.bf16.msra.mxu0 0
    %245 = vmatpush.bf16.msra.mxu0 0
    %246 = vmatpush.bf16.msra.mxu0 0
    %247 = vmatpush.bf16.msra.mxu0 0
    %248 = vmatpush.bf16.msra.mxu0 0
    %249 = vmatpush.bf16.msra.mxu0 %v240
    %250 = vmatpush.bf16.msra.mxu0 %v239
    %251 = vmatmul.bf16.gmra.mxu0 %v212
    %v252 = vpop.f32.mrf.mxu0
    %v253 = vadd.f32 0.0, %v252
    %v254 = vpop.f32.mrf.mxu0
    %255 = vdwg.mxu0
    %v256 = vadd.f32 %v146, %v224
    %v257 = vxor.u32 %v256, 2147483648
    %v258 = vmul.f32 %v257, 1.442695
    %v259 = vpow.pop %v258
    %v260 = vadd.f32 %v259, 1.0
    %v261 = vrcp.pop %v260
    %v262 = vmul.f32 %v260, %v261
    %v263 = vsub.f32 1.0, %v262
    %v264 = vmul.f32 %v261, %v263
    %v265 = vadd.f32 %v261, %v264
    %vm266 = vweird.f32 %v260
    %vm267 = vweird.f32 %v261
    %vm268 = vmor %vm266, %vm267
    %v269 = vsel %vm268, %v261, %v265
    %v270 = vand.u32 2147483647, %v260
    %vm271 = vcmp.eq.f32.partialorder %v270, 8.507059e+37
    %v272 = vand.u32 %v260, 2147483648
    %v273 = vor.u32 1.1754944e-38, %v272
    %v274 = vsel %vm271, %v273, %v269
    %v275 = vmul.f32 1.0, %v274
    %v276 = vtanh.pop %v256
    %v277 = vmul.f32 %v275, 0.0
    %279 = vrot.lane.b32.xlu0 %v276, 32
    %v280 = vpop.permute.xlu0 %279
    %v282 = vmul.f32 %v275, %v280
    %284 = vrot.lane.b32.xlu0 %v282, 32
    %v285 = vpop.permute.xlu0 %284
    %v287 = vadd.f32 %v277, %v285
    %v288 = vtanh.pop %v287
    %290 = vrot.lane.b32.xlu0 %v288, 32
    %v291 = vpop.permute.xlu0 %290
    %v293 = vmul.f32 %v275, %v291
    %v294 = vadd.f32 %v175, %v253
    %v295 = vpack.c.bf16 %v293, %v293
    %v296 = vld [vmem:[#allocation5] sm:$0xf]
    %v297 = vld [vmem:[#allocation5 + $0x4] sm:$0xf]
    %v298 = vld [vmem:[#allocation5 + $0x8] sm:$0xf]
    %v299 = vld [vmem:[#allocation5 + $0xc] sm:$0xf]
    %301 = vrot.lane.b32.xlu0 %v295, 64
    %v302 = vpop.permute.xlu0 %301
    %v307 = vunpack.c.l.b16 %v296
    %v308 = vunpack.c.l.b16 %v297
    %v309 = vunpack.c.l.b16 %v298
    %v310 = vunpack.c.l.b16 %v299
    %v311 = vpack.c.b16 %v308, %v307
    %v312 = vpack.c.b16 %v310, %v309
    %v316 = vsel %vm210, %v302, 0
    %318 = vmatpush.bf16.msra.mxu0 0
    %319 = vmatpush.bf16.msra.mxu0 0
    %320 = vmatpush.bf16.msra.mxu0 0
    %321 = vmatpush.bf16.msra.mxu0 0
    %322 = vmatpush.bf16.msra.mxu0 0
    %323 = vmatpush.bf16.msra.mxu0 0
    %324 = vmatpush.bf16.msra.mxu0 %v312
    %325 = vmatpush.bf16.msra.mxu0 %v311
    %326 = vmatmul.bf16.gmra.mxu0 %v316
    %v327 = vpop.f32.mrf.mxu0
    %v328 = vadd.f32 0.0, %v327
    %v329 = vpop.f32.mrf.mxu0
    %330 = vdwg.mxu0
    %v331 = vadd.f32 %v294, %v328
    %v332 = vxor.u32 %v331, 2147483648
    %v333 = vmul.f32 %v332, 1.442695
    %v334 = vpow.pop %v333
    %v335 = vadd.f32 %v334, 1.0
    %v336 = vrcp.pop %v335
    %v337 = vmul.f32 %v335, %v336
    %v338 = vsub.f32 1.0, %v337
    %v339 = vmul.f32 %v336, %v338
    %v340 = vadd.f32 %v336, %v339
    %vm341 = vweird.f32 %v335
    %vm342 = vweird.f32 %v336
    %vm343 = vmor %vm341, %vm342
    %v344 = vsel %vm343, %v336, %v340
    %v345 = vand.u32 2147483647, %v335
    %vm346 = vcmp.eq.f32.partialorder %v345, 8.507059e+37
    %v347 = vand.u32 %v335, 2147483648
    %v348 = vor.u32 1.1754944e-38, %v347
    %v349 = vsel %vm346, %v348, %v344
    %v350 = vmul.f32 1.0, %v349
    %v351 = vtanh.pop %v331
    %v352 = vmul.f32 %v350, 0.0
    %354 = vrot.lane.b32.xlu0 %v351, 32
    %v355 = vpop.permute.xlu0 %354
    %v357 = vmul.f32 %v350, %v355
    %359 = vrot.lane.b32.xlu0 %v357, 32
    %v360 = vpop.permute.xlu0 %359
    %v362 = vadd.f32 %v352, %v360
    %v363 = vtanh.pop %v362
    %365 = vrot.lane.b32.xlu0 %v363, 32
    %v366 = vpop.permute.xlu0 %365
    %v368 = vmul.f32 %v350, %v366
    %369 = vmatpush.bf16.msra.mxu0 0
    %370 = vmatpush.bf16.msra.mxu0 0
    %371 = vmatpush.bf16.msra.mxu0 0
    %372 = vmatpush.bf16.msra.mxu0 0
    %373 = vmatpush.bf16.msra.mxu0 0
    %374 = vmatpush.bf16.msra.mxu0 0
    %375 = vmatpush.bf16.msra.mxu0 %v207
    %376 = vmatpush.bf16.msra.mxu0 %v206
    %377 = vmatmul.bf16.gmra.mxu0 %v316
    %v378 = vpop.f32.mrf.mxu0
    %v379 = vadd.f32 0.0, %v378
    %v380 = vpop.f32.mrf.mxu0
    %381 = vdwg.mxu0
    %v382 = vpack.c.bf16 %v368, %v368
    %384 = vrot.lane.b32.xlu0 %v382, 64
    %v385 = vpop.permute.xlu0 %384
    %v387 = vsel %vm210, %v385, 0
    %389 = vmatpush.bf16.msra.mxu0 0
    %390 = vmatpush.bf16.msra.mxu0 0
    %391 = vmatpush.bf16.msra.mxu0 0
    %392 = vmatpush.bf16.msra.mxu0 0
    %393 = vmatpush.bf16.msra.mxu0 0
    %394 = vmatpush.bf16.msra.mxu0 0
    %395 = vmatpush.bf16.msra.mxu0 %v240
    %396 = vmatpush.bf16.msra.mxu0 %v239
    %397 = vmatmul.bf16.gmra.mxu0 %v387
    %v398 = vpop.f32.mrf.mxu0
    %v399 = vadd.f32 0.0, %v398
    %v400 = vpop.f32.mrf.mxu0
    %401 = vdwg.mxu0
    %v402 = vadd.f32 %v148, %v379
    %v403 = vxor.u32 %v402, 2147483648
    %v404 = vmul.f32 %v403, 1.442695
    %v405 = vpow.pop %v404
    %v406 = vadd.f32 %v405, 1.0
    %v407 = vrcp.pop %v406
    %v408 = vmul.f32 %v406, %v407
    %v409 = vsub.f32 1.0, %v408
    %v410 = vmul.f32 %v407, %v409
    %v411 = vadd.f32 %v407, %v410
    %vm412 = vweird.f32 %v406
    %vm413 = vweird.f32 %v407
    %vm414 = vmor %vm412, %vm413
    %v415 = vsel %vm414, %v407, %v411
    %v416 = vand.u32 2147483647, %v406
    %vm417 = vcmp.eq.f32.partialorder %v416, 8.507059e+37
    %v418 = vand.u32 %v406, 2147483648
    %v419 = vor.u32 1.1754944e-38, %v418
    %v420 = vsel %vm417, %v419, %v415
    %v421 = vmul.f32 1.0, %v420
    %v422 = vtanh.pop %v402
    %v423 = vmul.f32 %v421, %v287
    %425 = vrot.lane.b32.xlu0 %v422, 32
    %v426 = vpop.permute.xlu0 %425
    %v428 = vmul.f32 %v421, %v426
    %430 = vrot.lane.b32.xlu0 %v428, 32
    %v431 = vpop.permute.xlu0 %430
    %v433 = vadd.f32 %v423, %v431
    %v434 = vtanh.pop %v433
    %436 = vrot.lane.b32.xlu0 %v434, 32
    %v437 = vpop.permute.xlu0 %436
    %v439 = vmul.f32 %v421, %v437
    %v440 = vadd.f32 %v177, %v399
    %v441 = vpack.c.bf16 %v439, %v439
    %443 = vrot.lane.b32.xlu0 %v441, 64
    %v444 = vpop.permute.xlu0 %443
    %v446 = vsel %vm210, %v444, 0
    %448 = vmatpush.bf16.msra.mxu0 0
    %449 = vmatpush.bf16.msra.mxu0 0
    %450 = vmatpush.bf16.msra.mxu0 0
    %451 = vmatpush.bf16.msra.mxu0 0
    %452 = vmatpush.bf16.msra.mxu0 0
    %453 = vmatpush.bf16.msra.mxu0 0
    %454 = vmatpush.bf16.msra.mxu0 %v312
    %455 = vmatpush.bf16.msra.mxu0 %v311
    %456 = vmatmul.bf16.gmra.mxu0 %v446
    %v457 = vpop.f32.mrf.mxu0
    %v458 = vadd.f32 0.0, %v457
    %v459 = vpop.f32.mrf.mxu0
    %460 = vdwg.mxu0
    %v461 = vadd.f32 %v440, %v458
    %v462 = vxor.u32 %v461, 2147483648
    %v463 = vmul.f32 %v462, 1.442695
    %v464 = vpow.pop %v463
    %v465 = vadd.f32 %v464, 1.0
    %v466 = vrcp.pop %v465
    %v467 = vmul.f32 %v465, %v466
    %v468 = vsub.f32 1.0, %v467
    %v469 = vmul.f32 %v466, %v468
    %v470 = vadd.f32 %v466, %v469
    %vm471 = vweird.f32 %v465
    %vm472 = vweird.f32 %v466
    %vm473 = vmor %vm471, %vm472
    %v474 = vsel %vm473, %v466, %v470
    %v475 = vand.u32 2147483647, %v465
    %vm476 = vcmp.eq.f32.partialorder %v475, 8.507059e+37
    %v477 = vand.u32 %v465, 2147483648
    %v478 = vor.u32 1.1754944e-38, %v477
    %v479 = vsel %vm476, %v478, %v474
    %v480 = vmul.f32 1.0, %v479
    %v481 = vtanh.pop %v461
    %v482 = vmul.f32 %v480, %v362
    %484 = vrot.lane.b32.xlu0 %v481, 32
    %v485 = vpop.permute.xlu0 %484
    %v487 = vmul.f32 %v480, %v485
    %489 = vrot.lane.b32.xlu0 %v487, 32
    %v490 = vpop.permute.xlu0 %489
    %v492 = vadd.f32 %v482, %v490
    %v493 = vtanh.pop %v492
    %495 = vrot.lane.b32.xlu0 %v493, 32
    %v496 = vpop.permute.xlu0 %495
    %v498 = vmul.f32 %v480, %v496
    %499 = vmatpush.bf16.msra.mxu0 0
    %500 = vmatpush.bf16.msra.mxu0 0
    %501 = vmatpush.bf16.msra.mxu0 0
    %502 = vmatpush.bf16.msra.mxu0 0
    %503 = vmatpush.bf16.msra.mxu0 0
    %504 = vmatpush.bf16.msra.mxu0 0
    %505 = vmatpush.bf16.msra.mxu0 %v207
    %506 = vmatpush.bf16.msra.mxu0 %v206
    %507 = vmatmul.bf16.gmra.mxu0 %v446
    %v508 = vpop.f32.mrf.mxu0
    %v509 = vadd.f32 0.0, %v508
    %v510 = vpop.f32.mrf.mxu0
    %511 = vdwg.mxu0
    %v512 = vpack.c.bf16 %v498, %v498
    %514 = vrot.lane.b32.xlu0 %v512, 64
    %v515 = vpop.permute.xlu0 %514
    %v517 = vsel %vm210, %v515, 0
    %519 = vmatpush.bf16.msra.mxu0 0
    %520 = vmatpush.bf16.msra.mxu0 0
    %521 = vmatpush.bf16.msra.mxu0 0
    %522 = vmatpush.bf16.msra.mxu0 0
    %523 = vmatpush.bf16.msra.mxu0 0
    %524 = vmatpush.bf16.msra.mxu0 0
    %525 = vmatpush.bf16.msra.mxu0 %v240
    %526 = vmatpush.bf16.msra.mxu0 %v239
    %527 = vmatmul.bf16.gmra.mxu0 %v517
    %v528 = vpop.f32.mrf.mxu0
    %v529 = vadd.f32 0.0, %v528
    %v530 = vpop.f32.mrf.mxu0
    %531 = vdwg.mxu0
    %v532 = vadd.f32 %v151, %v509
    %v533 = vxor.u32 %v532, 2147483648
    %v534 = vmul.f32 %v533, 1.442695
    %v535 = vpow.pop %v534
    %v536 = vadd.f32 %v535, 1.0
    %v537 = vrcp.pop %v536
    %v538 = vmul.f32 %v536, %v537
    %v539 = vsub.f32 1.0, %v538
    %v540 = vmul.f32 %v537, %v539
    %v541 = vadd.f32 %v537, %v540
    %vm542 = vweird.f32 %v536
    %vm543 = vweird.f32 %v537
    %vm544 = vmor %vm542, %vm543
    %v545 = vsel %vm544, %v537, %v541
    %v546 = vand.u32 2147483647, %v536
    %vm547 = vcmp.eq.f32.partialorder %v546, 8.507059e+37
    %v548 = vand.u32 %v536, 2147483648
    %v549 = vor.u32 1.1754944e-38, %v548
    %v550 = vsel %vm547, %v549, %v545
    %v551 = vmul.f32 1.0, %v550
    %v552 = vtanh.pop %v532
    %v553 = vmul.f32 %v551, %v433
    %555 = vrot.lane.b32.xlu0 %v552, 32
    %v556 = vpop.permute.xlu0 %555
    %v558 = vmul.f32 %v551, %v556
    %560 = vrot.lane.b32.xlu0 %v558, 32
    %v561 = vpop.permute.xlu0 %560
    %v563 = vadd.f32 %v553, %v561
    %v564 = vtanh.pop %v563
    %566 = vrot.lane.b32.xlu0 %v564, 32
    %v567 = vpop.permute.xlu0 %566
    %v569 = vmul.f32 %v551, %v567
    %v570 = vadd.f32 %v180, %v529
    %v571 = vpack.c.bf16 %v569, %v569
    %573 = vrot.lane.b32.xlu0 %v571, 64
    %v574 = vpop.permute.xlu0 %573
    %v576 = vsel %vm210, %v574, 0
    %578 = vmatpush.bf16.msra.mxu0 0
    %579 = vmatpush.bf16.msra.mxu0 0
    %580 = vmatpush.bf16.msra.mxu0 0
    %581 = vmatpush.bf16.msra.mxu0 0
    %582 = vmatpush.bf16.msra.mxu0 0
    %583 = vmatpush.bf16.msra.mxu0 0
    %584 = vmatpush.bf16.msra.mxu0 %v312
    %585 = vmatpush.bf16.msra.mxu0 %v311
    %586 = vmatmul.bf16.gmra.mxu0 %v576
    %v587 = vpop.f32.mrf.mxu0
    %v588 = vadd.f32 0.0, %v587
    %v589 = vpop.f32.mrf.mxu0
    %590 = vdwg.mxu0
    %v591 = vadd.f32 %v570, %v588
    %v592 = vxor.u32 %v591, 2147483648
    %v593 = vmul.f32 %v592, 1.442695
    %v594 = vpow.pop %v593
    %v595 = vadd.f32 %v594, 1.0
    %v596 = vrcp.pop %v595
    %v597 = vmul.f32 %v595, %v596
    %v598 = vsub.f32 1.0, %v597
    %v599 = vmul.f32 %v596, %v598
    %v600 = vadd.f32 %v596, %v599
    %vm601 = vweird.f32 %v595
    %vm602 = vweird.f32 %v596
    %vm603 = vmor %vm601, %vm602
    %v604 = vsel %vm603, %v596, %v600
    %v605 = vand.u32 2147483647, %v595
    %vm606 = vcmp.eq.f32.partialorder %v605, 8.507059e+37
    %v607 = vand.u32 %v595, 2147483648
    %v608 = vor.u32 1.1754944e-38, %v607
    %v609 = vsel %vm606, %v608, %v604
    %v610 = vmul.f32 1.0, %v609
    %v611 = vtanh.pop %v591
    %v612 = vmul.f32 %v610, %v492
    %614 = vrot.lane.b32.xlu0 %v611, 32
    %v615 = vpop.permute.xlu0 %614
    %v617 = vmul.f32 %v610, %v615
    %619 = vrot.lane.b32.xlu0 %v617, 32
    %v620 = vpop.permute.xlu0 %619
    %v622 = vadd.f32 %v612, %v620
    %v623 = vtanh.pop %v622
    %625 = vrot.lane.b32.xlu0 %v623, 32
    %v626 = vpop.permute.xlu0 %625
    %v628 = vmul.f32 %v610, %v626
    %629 = vmatpush.bf16.msra.mxu0 0
    %630 = vmatpush.bf16.msra.mxu0 0
    %631 = vmatpush.bf16.msra.mxu0 0
    %632 = vmatpush.bf16.msra.mxu0 0
    %633 = vmatpush.bf16.msra.mxu0 0
    %634 = vmatpush.bf16.msra.mxu0 0
    %635 = vmatpush.bf16.msra.mxu0 %v207
    %636 = vmatpush.bf16.msra.mxu0 %v206
    %637 = vmatmul.bf16.gmra.mxu0 %v576
    %v638 = vpop.f32.mrf.mxu0
    %v639 = vadd.f32 0.0, %v638
    %v640 = vpop.f32.mrf.mxu0
    %641 = vdwg.mxu0
    %v642 = vpack.c.bf16 %v628, %v628
    %644 = vrot.lane.b32.xlu0 %v642, 64
    %v645 = vpop.permute.xlu0 %644
    %v647 = vsel %vm210, %v645, 0
    %649 = vmatpush.bf16.msra.mxu0 0
    %650 = vmatpush.bf16.msra.mxu0 0
    %651 = vmatpush.bf16.msra.mxu0 0
    %652 = vmatpush.bf16.msra.mxu0 0
    %653 = vmatpush.bf16.msra.mxu0 0
    %654 = vmatpush.bf16.msra.mxu0 0
    %655 = vmatpush.bf16.msra.mxu0 %v240
    %656 = vmatpush.bf16.msra.mxu0 %v239
    %657 = vmatmul.bf16.gmra.mxu0 %v647
    %v658 = vpop.f32.mrf.mxu0
    %v659 = vadd.f32 0.0, %v658
    %v660 = vpop.f32.mrf.mxu0
    %661 = vdwg.mxu0
    %v662 = vadd.f32 %v153, %v639
    %v663 = vxor.u32 %v662, 2147483648
    %v664 = vmul.f32 %v663, 1.442695
    %v665 = vpow.pop %v664
    %v666 = vadd.f32 %v665, 1.0
    %v667 = vrcp.pop %v666
    %v668 = vmul.f32 %v666, %v667
    %v669 = vsub.f32 1.0, %v668
    %v670 = vmul.f32 %v667, %v669
    %v671 = vadd.f32 %v667, %v670
    %vm672 = vweird.f32 %v666
    %vm673 = vweird.f32 %v667
    %vm674 = vmor %vm672, %vm673
    %v675 = vsel %vm674, %v667, %v671
    %v676 = vand.u32 2147483647, %v666
    %vm677 = vcmp.eq.f32.partialorder %v676, 8.507059e+37
    %v678 = vand.u32 %v666, 2147483648
    %v679 = vor.u32 1.1754944e-38, %v678
    %v680 = vsel %vm677, %v679, %v675
    %v681 = vmul.f32 1.0, %v680
    %v682 = vtanh.pop %v662
    %v683 = vmul.f32 %v681, %v563
    %685 = vrot.lane.b32.xlu0 %v682, 32
    %v686 = vpop.permute.xlu0 %685
    %v688 = vmul.f32 %v681, %v686
    %690 = vrot.lane.b32.xlu0 %v688, 32
    %v691 = vpop.permute.xlu0 %690
    %v693 = vadd.f32 %v683, %v691
    %v694 = vtanh.pop %v693
    %696 = vrot.lane.b32.xlu0 %v694, 32
    %v697 = vpop.permute.xlu0 %696
    %v699 = vmul.f32 %v681, %v697
    %v700 = vadd.f32 %v182, %v659
    %v701 = vpack.c.bf16 %v699, %v699
    %703 = vrot.lane.b32.xlu0 %v701, 64
    %v704 = vpop.permute.xlu0 %703
    %v706 = vsel %vm210, %v704, 0
    %708 = vmatpush.bf16.msra.mxu0 0
    %709 = vmatpush.bf16.msra.mxu0 0
    %710 = vmatpush.bf16.msra.mxu0 0
    %711 = vmatpush.bf16.msra.mxu0 0
    %712 = vmatpush.bf16.msra.mxu0 0
    %713 = vmatpush.bf16.msra.mxu0 0
    %714 = vmatpush.bf16.msra.mxu0 %v312
    %715 = vmatpush.bf16.msra.mxu0 %v311
    %716 = vmatmul.bf16.gmra.mxu0 %v706
    %v717 = vpop.f32.mrf.mxu0
    %v718 = vadd.f32 0.0, %v717
    %v719 = vpop.f32.mrf.mxu0
    %720 = vdwg.mxu0
    %v721 = vadd.f32 %v700, %v718
    %v722 = vxor.u32 %v721, 2147483648
    %v723 = vmul.f32 %v722, 1.442695
    %v724 = vpow.pop %v723
    %v725 = vadd.f32 %v724, 1.0
    %v726 = vrcp.pop %v725
    %v727 = vmul.f32 %v725, %v726
    %v728 = vsub.f32 1.0, %v727
    %v729 = vmul.f32 %v726, %v728
    %v730 = vadd.f32 %v726, %v729
    %vm731 = vweird.f32 %v725
    %vm732 = vweird.f32 %v726
    %vm733 = vmor %vm731, %vm732
    %v734 = vsel %vm733, %v726, %v730
    %v735 = vand.u32 2147483647, %v725
    %vm736 = vcmp.eq.f32.partialorder %v735, 8.507059e+37
    %v737 = vand.u32 %v725, 2147483648
    %v738 = vor.u32 1.1754944e-38, %v737
    %v739 = vsel %vm736, %v738, %v734
    %v740 = vmul.f32 1.0, %v739
    %v741 = vtanh.pop %v721
    %v742 = vmul.f32 %v740, %v622
    %744 = vrot.lane.b32.xlu0 %v741, 32
    %v745 = vpop.permute.xlu0 %744
    %v747 = vmul.f32 %v740, %v745
    %749 = vrot.lane.b32.xlu0 %v747, 32
    %v750 = vpop.permute.xlu0 %749
    %v752 = vadd.f32 %v742, %v750
    %v753 = vtanh.pop %v752
    %755 = vrot.lane.b32.xlu0 %v753, 32
    %v756 = vpop.permute.xlu0 %755
    %v758 = vmul.f32 %v740, %v756
    %759 = vmatpush.bf16.msra.mxu0 0
    %760 = vmatpush.bf16.msra.mxu0 0
    %761 = vmatpush.bf16.msra.mxu0 0
    %762 = vmatpush.bf16.msra.mxu0 0
    %763 = vmatpush.bf16.msra.mxu0 0
    %764 = vmatpush.bf16.msra.mxu0 0
    %765 = vmatpush.bf16.msra.mxu0 %v207
    %766 = vmatpush.bf16.msra.mxu0 %v206
    %767 = vmatmul.bf16.gmra.mxu0 %v706
    %v768 = vpop.f32.mrf.mxu0
    %v769 = vadd.f32 0.0, %v768
    %v770 = vpop.f32.mrf.mxu0
    %771 = vdwg.mxu0
    %v772 = vpack.c.bf16 %v758, %v758
    %774 = vrot.lane.b32.xlu0 %v772, 64
    %v775 = vpop.permute.xlu0 %774
    %v777 = vsel %vm210, %v775, 0
    %779 = vmatpush.bf16.msra.mxu0 0
    %780 = vmatpush.bf16.msra.mxu0 0
    %781 = vmatpush.bf16.msra.mxu0 0
    %782 = vmatpush.bf16.msra.mxu0 0
    %783 = vmatpush.bf16.msra.mxu0 0
    %784 = vmatpush.bf16.msra.mxu0 0
    %785 = vmatpush.bf16.msra.mxu0 %v240
    %786 = vmatpush.bf16.msra.mxu0 %v239
    %787 = vmatmul.bf16.gmra.mxu0 %v777
    %v788 = vpop.f32.mrf.mxu0
    %v789 = vadd.f32 0.0, %v788
    %v790 = vpop.f32.mrf.mxu0
    %791 = vdwg.mxu0
    %v792 = vadd.f32 %v156, %v769
    %v793 = vxor.u32 %v792, 2147483648
    %v794 = vmul.f32 %v793, 1.442695
    %v795 = vpow.pop %v794
    %v796 = vadd.f32 %v795, 1.0
    %v797 = vrcp.pop %v796
    %v798 = vmul.f32 %v796, %v797
    %v799 = vsub.f32 1.0, %v798
    %v800 = vmul.f32 %v797, %v799
    %v801 = vadd.f32 %v797, %v800
    %vm802 = vweird.f32 %v796
    %vm803 = vweird.f32 %v797
    %vm804 = vmor %vm802, %vm803
    %v805 = vsel %vm804, %v797, %v801
    %v806 = vand.u32 2147483647, %v796
    %vm807 = vcmp.eq.f32.partialorder %v806, 8.507059e+37
    %v808 = vand.u32 %v796, 2147483648
    %v809 = vor.u32 1.1754944e-38, %v808
    %v810 = vsel %vm807, %v809, %v805
    %v811 = vmul.f32 1.0, %v810
    %v812 = vtanh.pop %v792
    %v813 = vmul.f32 %v811, %v693
    %815 = vrot.lane.b32.xlu0 %v812, 32
    %v816 = vpop.permute.xlu0 %815
    %v818 = vmul.f32 %v811, %v816
    %820 = vrot.lane.b32.xlu0 %v818, 32
    %v821 = vpop.permute.xlu0 %820
    %v823 = vadd.f32 %v813, %v821
    %v824 = vtanh.pop %v823
    %826 = vrot.lane.b32.xlu0 %v824, 32
    %v827 = vpop.permute.xlu0 %826
    %v829 = vmul.f32 %v811, %v827
    %v830 = vadd.f32 %v185, %v789
    %v831 = vpack.c.bf16 %v829, %v829
    %833 = vrot.lane.b32.xlu0 %v831, 64
    %v834 = vpop.permute.xlu0 %833
    %v836 = vsel %vm210, %v834, 0
    %838 = vmatpush.bf16.msra.mxu0 0
    %839 = vmatpush.bf16.msra.mxu0 0
    %840 = vmatpush.bf16.msra.mxu0 0
    %841 = vmatpush.bf16.msra.mxu0 0
    %842 = vmatpush.bf16.msra.mxu0 0
    %843 = vmatpush.bf16.msra.mxu0 0
    %844 = vmatpush.bf16.msra.mxu0 %v312
    %845 = vmatpush.bf16.msra.mxu0 %v311
    %846 = vmatmul.bf16.gmra.mxu0 %v836
    %v847 = vpop.f32.mrf.mxu0
    %v848 = vadd.f32 0.0, %v847
    %v849 = vpop.f32.mrf.mxu0
    %850 = vdwg.mxu0
    %v851 = vadd.f32 %v830, %v848
    %v852 = vxor.u32 %v851, 2147483648
    %v853 = vmul.f32 %v852, 1.442695
    %v854 = vpow.pop %v853
    %v855 = vadd.f32 %v854, 1.0
    %v856 = vrcp.pop %v855
    %v857 = vmul.f32 %v855, %v856
    %v858 = vsub.f32 1.0, %v857
    %v859 = vmul.f32 %v856, %v858
    %v860 = vadd.f32 %v856, %v859
    %vm861 = vweird.f32 %v855
    %vm862 = vweird.f32 %v856
    %vm863 = vmor %vm861, %vm862
    %v864 = vsel %vm863, %v856, %v860
    %v865 = vand.u32 2147483647, %v855
    %vm866 = vcmp.eq.f32.partialorder %v865, 8.507059e+37
    %v867 = vand.u32 %v855, 2147483648
    %v868 = vor.u32 1.1754944e-38, %v867
    %v869 = vsel %vm866, %v868, %v864
    %v870 = vmul.f32 1.0, %v869
    %v871 = vtanh.pop %v851
    %v872 = vmul.f32 %v870, %v752
    %874 = vrot.lane.b32.xlu0 %v871, 32
    %v875 = vpop.permute.xlu0 %874
    %v877 = vmul.f32 %v870, %v875
    %879 = vrot.lane.b32.xlu0 %v877, 32
    %v880 = vpop.permute.xlu0 %879
    %v882 = vadd.f32 %v872, %v880
    %v883 = vtanh.pop %v882
    %885 = vrot.lane.b32.xlu0 %v883, 32
    %v886 = vpop.permute.xlu0 %885
    %v888 = vmul.f32 %v870, %v886
    %889 = vmatpush.bf16.msra.mxu0 0
    %890 = vmatpush.bf16.msra.mxu0 0
    %891 = vmatpush.bf16.msra.mxu0 0
    %892 = vmatpush.bf16.msra.mxu0 0
    %893 = vmatpush.bf16.msra.mxu0 0
    %894 = vmatpush.bf16.msra.mxu0 0
    %895 = vmatpush.bf16.msra.mxu0 %v207
    %896 = vmatpush.bf16.msra.mxu0 %v206
    %897 = vmatmul.bf16.gmra.mxu0 %v836
    %v898 = vpop.f32.mrf.mxu0
    %v899 = vadd.f32 0.0, %v898
    %v900 = vpop.f32.mrf.mxu0
    %901 = vdwg.mxu0
    %v902 = vpack.c.bf16 %v888, %v888
    %904 = vrot.lane.b32.xlu0 %v902, 64
    %v905 = vpop.permute.xlu0 %904
    %v907 = vsel %vm210, %v905, 0
    %909 = vmatpush.bf16.msra.mxu0 0
    %910 = vmatpush.bf16.msra.mxu0 0
    %911 = vmatpush.bf16.msra.mxu0 0
    %912 = vmatpush.bf16.msra.mxu0 0
    %913 = vmatpush.bf16.msra.mxu0 0
    %914 = vmatpush.bf16.msra.mxu0 0
    %915 = vmatpush.bf16.msra.mxu0 %v240
    %916 = vmatpush.bf16.msra.mxu0 %v239
    %917 = vmatmul.bf16.gmra.mxu0 %v907
    %v918 = vpop.f32.mrf.mxu0
    %v919 = vadd.f32 0.0, %v918
    %v920 = vpop.f32.mrf.mxu0
    %921 = vdwg.mxu0
    %v922 = vadd.f32 %v158, %v899
    %v923 = vxor.u32 %v922, 2147483648
    %v924 = vmul.f32 %v923, 1.442695
    %v925 = vpow.pop %v924
    %v926 = vadd.f32 %v925, 1.0
    %v927 = vrcp.pop %v926
    %v928 = vmul.f32 %v926, %v927
    %v929 = vsub.f32 1.0, %v928
    %v930 = vmul.f32 %v927, %v929
    %v931 = vadd.f32 %v927, %v930
    %vm932 = vweird.f32 %v926
    %vm933 = vweird.f32 %v927
    %vm934 = vmor %vm932, %vm933
    %v935 = vsel %vm934, %v927, %v931
    %v936 = vand.u32 2147483647, %v926
    %vm937 = vcmp.eq.f32.partialorder %v936, 8.507059e+37
    %v938 = vand.u32 %v926, 2147483648
    %v939 = vor.u32 1.1754944e-38, %v938
    %v940 = vsel %vm937, %v939, %v935
    %v941 = vmul.f32 1.0, %v940
    %v942 = vtanh.pop %v922
    %v943 = vmul.f32 %v941, %v823
    %945 = vrot.lane.b32.xlu0 %v942, 32
    %v946 = vpop.permute.xlu0 %945
    %v948 = vmul.f32 %v941, %v946
    %950 = vrot.lane.b32.xlu0 %v948, 32
    %v951 = vpop.permute.xlu0 %950
    %v953 = vadd.f32 %v943, %v951
    %v954 = vtanh.pop %v953
    %956 = vrot.lane.b32.xlu0 %v954, 32
    %v957 = vpop.permute.xlu0 %956
    %v959 = vmul.f32 %v941, %v957
    %v960 = vadd.f32 %v187, %v919
    %v961 = vpack.c.bf16 %v959, %v959
    %963 = vrot.lane.b32.xlu0 %v961, 64
    %v964 = vpop.permute.xlu0 %963
    %v966 = vsel %vm210, %v964, 0
    %968 = vmatpush.bf16.msra.mxu0 0
    %969 = vmatpush.bf16.msra.mxu0 0
    %970 = vmatpush.bf16.msra.mxu0 0
    %971 = vmatpush.bf16.msra.mxu0 0
    %972 = vmatpush.bf16.msra.mxu0 0
    %973 = vmatpush.bf16.msra.mxu0 0
    %974 = vmatpush.bf16.msra.mxu0 %v312
    %975 = vmatpush.bf16.msra.mxu0 %v311
    %976 = vmatmul.bf16.gmra.mxu0 %v966
    %v977 = vpop.f32.mrf.mxu0
    %v978 = vadd.f32 0.0, %v977
    %v979 = vpop.f32.mrf.mxu0
    %980 = vdwg.mxu0
    %v981 = vadd.f32 %v960, %v978
    %v982 = vxor.u32 %v981, 2147483648
    %v983 = vmul.f32 %v982, 1.442695
    %v984 = vpow.pop %v983
    %v985 = vadd.f32 %v984, 1.0
    %v986 = vrcp.pop %v985
    %v987 = vmul.f32 %v985, %v986
    %v988 = vsub.f32 1.0, %v987
    %v989 = vmul.f32 %v986, %v988
    %v990 = vadd.f32 %v986, %v989
    %vm991 = vweird.f32 %v985
    %vm992 = vweird.f32 %v986
    %vm993 = vmor %vm991, %vm992
    %v994 = vsel %vm993, %v986, %v990
    %v995 = vand.u32 2147483647, %v985
    %vm996 = vcmp.eq.f32.partialorder %v995, 8.507059e+37
    %v997 = vand.u32 %v985, 2147483648
    %v998 = vor.u32 1.1754944e-38, %v997
    %v999 = vsel %vm996, %v998, %v994
    %v1000 = vmul.f32 1.0, %v999
    %v1001 = vtanh.pop %v981
    %v1002 = vmul.f32 %v1000, %v882
    %1004 = vrot.lane.b32.xlu0 %v1001, 32
    %v1005 = vpop.permute.xlu0 %1004
    %v1007 = vmul.f32 %v1000, %v1005
    %1009 = vrot.lane.b32.xlu0 %v1007, 32
    %v1010 = vpop.permute.xlu0 %1009
    %v1012 = vadd.f32 %v1002, %v1010
    %v1013 = vtanh.pop %v1012
    %1015 = vrot.lane.b32.xlu0 %v1013, 32
    %v1016 = vpop.permute.xlu0 %1015
    %v1018 = vmul.f32 %v1000, %v1016
    %1019 = vmatpush.bf16.msra.mxu0 0
    %1020 = vmatpush.bf16.msra.mxu0 0
    %1021 = vmatpush.bf16.msra.mxu0 0
    %1022 = vmatpush.bf16.msra.mxu0 0
    %1023 = vmatpush.bf16.msra.mxu0 0
    %1024 = vmatpush.bf16.msra.mxu0 0
    %1025 = vmatpush.bf16.msra.mxu0 %v207
    %1026 = vmatpush.bf16.msra.mxu0 %v206
    %1027 = vmatmul.bf16.gmra.mxu0 %v966
    %v1028 = vpop.f32.mrf.mxu0
    %v1029 = vadd.f32 0.0, %v1028
    %v1030 = vpop.f32.mrf.mxu0
    %1031 = vdwg.mxu0
    %v1032 = vpack.c.bf16 %v1018, %v1018
    %1034 = vrot.lane.b32.xlu0 %v1032, 64
    %v1035 = vpop.permute.xlu0 %1034
    %v1037 = vsel %vm210, %v1035, 0
    %1039 = vmatpush.bf16.msra.mxu0 0
    %1040 = vmatpush.bf16.msra.mxu0 0
    %1041 = vmatpush.bf16.msra.mxu0 0
    %1042 = vmatpush.bf16.msra.mxu0 0
    %1043 = vmatpush.bf16.msra.mxu0 0
    %1044 = vmatpush.bf16.msra.mxu0 0
    %1045 = vmatpush.bf16.msra.mxu0 %v240
    %1046 = vmatpush.bf16.msra.mxu0 %v239
    %1047 = vmatmul.bf16.gmra.mxu0 %v1037
    %v1048 = vpop.f32.mrf.mxu0
    %v1049 = vadd.f32 0.0, %v1048
    %v1050 = vpop.f32.mrf.mxu0
    %1051 = vdwg.mxu0
    %v1052 = vadd.f32 %v161, %v1029
    %v1053 = vxor.u32 %v1052, 2147483648
    %v1054 = vmul.f32 %v1053, 1.442695
    %v1055 = vpow.pop %v1054
    %v1056 = vadd.f32 %v1055, 1.0
    %v1057 = vrcp.pop %v1056
    %v1058 = vmul.f32 %v1056, %v1057
    %v1059 = vsub.f32 1.0, %v1058
    %v1060 = vmul.f32 %v1057, %v1059
    %v1061 = vadd.f32 %v1057, %v1060
    %vm1062 = vweird.f32 %v1056
    %vm1063 = vweird.f32 %v1057
    %vm1064 = vmor %vm1062, %vm1063
    %v1065 = vsel %vm1064, %v1057, %v1061
    %v1066 = vand.u32 2147483647, %v1056
    %vm1067 = vcmp.eq.f32.partialorder %v1066, 8.507059e+37
    %v1068 = vand.u32 %v1056, 2147483648
    %v1069 = vor.u32 1.1754944e-38, %v1068
    %v1070 = vsel %vm1067, %v1069, %v1065
    %v1071 = vmul.f32 1.0, %v1070
    %v1072 = vtanh.pop %v1052
    %v1073 = vmul.f32 %v1071, %v953
    %1075 = vrot.lane.b32.xlu0 %v1072, 32
    %v1076 = vpop.permute.xlu0 %1075
    %v1078 = vmul.f32 %v1071, %v1076
    %1080 = vrot.lane.b32.xlu0 %v1078, 32
    %v1081 = vpop.permute.xlu0 %1080
    %v1083 = vadd.f32 %v1073, %v1081
    %v1084 = vtanh.pop %v1083
    %1086 = vrot.lane.b32.xlu0 %v1084, 32
    %v1087 = vpop.permute.xlu0 %1086
    %v1089 = vmul.f32 %v1071, %v1087
    %v1090 = vadd.f32 %v190, %v1049
    %v1091 = vpack.c.bf16 %v1089, %v1089
    %1093 = vrot.lane.b32.xlu0 %v1091, 64
    %v1094 = vpop.permute.xlu0 %1093
    %v1096 = vsel %vm210, %v1094, 0
    %1098 = vmatpush.bf16.msra.mxu0 0
    %1099 = vmatpush.bf16.msra.mxu0 0
    %1100 = vmatpush.bf16.msra.mxu0 0
    %1101 = vmatpush.bf16.msra.mxu0 0
    %1102 = vmatpush.bf16.msra.mxu0 0
    %1103 = vmatpush.bf16.msra.mxu0 0
    %1104 = vmatpush.bf16.msra.mxu0 %v312
    %1105 = vmatpush.bf16.msra.mxu0 %v311
    %1106 = vmatmul.bf16.gmra.mxu0 %v1096
    %v1107 = vpop.f32.mrf.mxu0
    %v1108 = vadd.f32 0.0, %v1107
    %v1109 = vpop.f32.mrf.mxu0
    %1110 = vdwg.mxu0
    %v1111 = vadd.f32 %v1090, %v1108
    %v1112 = vxor.u32 %v1111, 2147483648
    %v1113 = vmul.f32 %v1112, 1.442695
    %v1114 = vpow.pop %v1113
    %v1115 = vadd.f32 %v1114, 1.0
    %v1116 = vrcp.pop %v1115
    %v1117 = vmul.f32 %v1115, %v1116
    %v1118 = vsub.f32 1.0, %v1117
    %v1119 = vmul.f32 %v1116, %v1118
    %v1120 = vadd.f32 %v1116, %v1119
    %vm1121 = vweird.f32 %v1115
    %vm1122 = vweird.f32 %v1116
    %vm1123 = vmor %vm1121, %vm1122
    %v1124 = vsel %vm1123, %v1116, %v1120
    %v1125 = vand.u32 2147483647, %v1115
    %vm1126 = vcmp.eq.f32.partialorder %v1125, 8.507059e+37
    %v1127 = vand.u32 %v1115, 2147483648
    %v1128 = vor.u32 1.1754944e-38, %v1127
    %v1129 = vsel %vm1126, %v1128, %v1124
    %v1130 = vmul.f32 1.0, %v1129
    %v1131 = vtanh.pop %v1111
    %v1132 = vmul.f32 %v1130, %v1012
    %1134 = vrot.lane.b32.xlu0 %v1131, 32
    %v1135 = vpop.permute.xlu0 %1134
    %v1137 = vmul.f32 %v1130, %v1135
    %1139 = vrot.lane.b32.xlu0 %v1137, 32
    %v1140 = vpop.permute.xlu0 %1139
    %v1142 = vadd.f32 %v1132, %v1140
    %v1143 = vtanh.pop %v1142
    %1145 = vrot.lane.b32.xlu0 %v1143, 32
    %v1146 = vpop.permute.xlu0 %1145
    %v1148 = vmul.f32 %v1130, %v1146
    %1149 = vmatpush.bf16.msra.mxu0 0
    %1150 = vmatpush.bf16.msra.mxu0 0
    %1151 = vmatpush.bf16.msra.mxu0 0
    %1152 = vmatpush.bf16.msra.mxu0 0
    %1153 = vmatpush.bf16.msra.mxu0 0
    %1154 = vmatpush.bf16.msra.mxu0 0
    %1155 = vmatpush.bf16.msra.mxu0 %v207
    %1156 = vmatpush.bf16.msra.mxu0 %v206
    %1157 = vmatmul.bf16.gmra.mxu0 %v1096
    %v1158 = vpop.f32.mrf.mxu0
    %v1159 = vadd.f32 0.0, %v1158
    %v1160 = vpop.f32.mrf.mxu0
    %1161 = vdwg.mxu0
    %v1162 = vpack.c.bf16 %v1148, %v1148
    %1164 = vrot.lane.b32.xlu0 %v1162, 64
    %v1165 = vpop.permute.xlu0 %1164
    %v1167 = vsel %vm210, %v1165, 0
    %1169 = vmatpush.bf16.msra.mxu0 0
    %1170 = vmatpush.bf16.msra.mxu0 0
    %1171 = vmatpush.bf16.msra.mxu0 0
    %1172 = vmatpush.bf16.msra.mxu0 0
    %1173 = vmatpush.bf16.msra.mxu0 0
    %1174 = vmatpush.bf16.msra.mxu0 0
    %1175 = vmatpush.bf16.msra.mxu0 %v240
    %1176 = vmatpush.bf16.msra.mxu0 %v239
    %1177 = vmatmul.bf16.gmra.mxu0 %v1167
    %v1178 = vpop.f32.mrf.mxu0
    %v1179 = vadd.f32 0.0, %v1178
    %v1180 = vpop.f32.mrf.mxu0
    %1181 = vdwg.mxu0
    %v1182 = vadd.f32 %v163, %v1159
    %v1183 = vxor.u32 %v1182, 2147483648
    %v1184 = vmul.f32 %v1183, 1.442695
    %v1185 = vpow.pop %v1184
    %v1186 = vadd.f32 %v1185, 1.0
    %v1187 = vrcp.pop %v1186
    %v1188 = vmul.f32 %v1186, %v1187
    %v1189 = vsub.f32 1.0, %v1188
    %v1190 = vmul.f32 %v1187, %v1189
    %v1191 = vadd.f32 %v1187, %v1190
    %vm1192 = vweird.f32 %v1186
    %vm1193 = vweird.f32 %v1187
    %vm1194 = vmor %vm1192, %vm1193
    %v1195 = vsel %vm1194, %v1187, %v1191
    %v1196 = vand.u32 2147483647, %v1186
    %vm1197 = vcmp.eq.f32.partialorder %v1196, 8.507059e+37
    %v1198 = vand.u32 %v1186, 2147483648
    %v1199 = vor.u32 1.1754944e-38, %v1198
    %v1200 = vsel %vm1197, %v1199, %v1195
    %v1201 = vmul.f32 1.0, %v1200
    %v1202 = vtanh.pop %v1182
    %v1203 = vmul.f32 %v1201, %v1083
    %1205 = vrot.lane.b32.xlu0 %v1202, 32
    %v1206 = vpop.permute.xlu0 %1205
    %v1208 = vmul.f32 %v1201, %v1206
    %1210 = vrot.lane.b32.xlu0 %v1208, 32
    %v1211 = vpop.permute.xlu0 %1210
    %v1213 = vadd.f32 %v1203, %v1211
    %v1214 = vtanh.pop %v1213
    %1216 = vrot.lane.b32.xlu0 %v1214, 32
    %v1217 = vpop.permute.xlu0 %1216
    %v1219 = vmul.f32 %v1201, %v1217
    %v1220 = vadd.f32 %v192, %v1179
    %v1221 = vpack.c.bf16 %v1219, %v1219
    %1223 = vrot.lane.b32.xlu0 %v1221, 64
    %v1224 = vpop.permute.xlu0 %1223
    %v1226 = vsel %vm210, %v1224, 0
    %1228 = vmatpush.bf16.msra.mxu0 0
    %1229 = vmatpush.bf16.msra.mxu0 0
    %1230 = vmatpush.bf16.msra.mxu0 0
    %1231 = vmatpush.bf16.msra.mxu0 0
    %1232 = vmatpush.bf16.msra.mxu0 0
    %1233 = vmatpush.bf16.msra.mxu0 0
    %1234 = vmatpush.bf16.msra.mxu0 %v312
    %1235 = vmatpush.bf16.msra.mxu0 %v311
    %1236 = vmatmul.bf16.gmra.mxu0 %v1226
    %v1237 = vpop.f32.mrf.mxu0
    %v1238 = vadd.f32 0.0, %v1237
    %v1239 = vpop.f32.mrf.mxu0
    %1240 = vdwg.mxu0
    %v1241 = vadd.f32 %v1220, %v1238
    %v1242 = vxor.u32 %v1241, 2147483648
    %v1243 = vmul.f32 %v1242, 1.442695
    %v1244 = vpow.pop %v1243
    %v1245 = vadd.f32 %v1244, 1.0
    %v1246 = vrcp.pop %v1245
    %v1247 = vmul.f32 %v1245, %v1246
    %v1248 = vsub.f32 1.0, %v1247
    %v1249 = vmul.f32 %v1246, %v1248
    %v1250 = vadd.f32 %v1246, %v1249
    %vm1251 = vweird.f32 %v1245
    %vm1252 = vweird.f32 %v1246
    %vm1253 = vmor %vm1251, %vm1252
    %v1254 = vsel %vm1253, %v1246, %v1250
    %v1255 = vand.u32 2147483647, %v1245
    %vm1256 = vcmp.eq.f32.partialorder %v1255, 8.507059e+37
    %v1257 = vand.u32 %v1245, 2147483648
    %v1258 = vor.u32 1.1754944e-38, %v1257
    %v1259 = vsel %vm1256, %v1258, %v1254
    %v1260 = vmul.f32 1.0, %v1259
    %v1261 = vtanh.pop %v1241
    %v1262 = vmul.f32 %v1260, %v1142
    %1264 = vrot.lane.b32.xlu0 %v1261, 32
    %v1265 = vpop.permute.xlu0 %1264
    %v1267 = vmul.f32 %v1260, %v1265
    %1269 = vrot.lane.b32.xlu0 %v1267, 32
    %v1270 = vpop.permute.xlu0 %1269
    %v1272 = vadd.f32 %v1262, %v1270
    %v1273 = vtanh.pop %v1272
    %1275 = vrot.lane.b32.xlu0 %v1273, 32
    %v1276 = vpop.permute.xlu0 %1275
    %v1278 = vmul.f32 %v1260, %v1276
    %v1279 = vpack.c.bf16 %v1278, %v1278
    %v1280 = vld [vmem:[#allocation7] sm:$0xf]
    %v1281 = vld [vmem:[#allocation7 + $0x4] sm:$0xf]
    %v1282 = vld [vmem:[#allocation7 + $0x8] sm:$0xf]
    %v1283 = vld [vmem:[#allocation7 + $0xc] sm:$0xf]
    %v1284 = vld [vmem:[%s7] sm:$0x1]
    %v1286 = vperm.slane %v1284, 0
    %1289 = vrot.lane.b32.xlu0 %v1279, 64
    %v1290 = vpop.permute.xlu0 %1289
    %v1295 = vunpack.c.l.b16 %v1280
    %v1296 = vunpack.c.l.b16 %v1281
    %v1297 = vunpack.c.l.b16 %v1282
    %v1298 = vunpack.c.l.b16 %v1283
    %v1299 = vpack.c.b16 %v1296, %v1295
    %v1300 = vpack.c.b16 %v1298, %v1297
    %v1304 = vsel %vm210, %v1290, 0
    %1306 = vmatpush.bf16.msra.mxu0 0
    %1307 = vmatpush.bf16.msra.mxu0 0
    %1308 = vmatpush.bf16.msra.mxu0 0
    %1309 = vmatpush.bf16.msra.mxu0 0
    %1310 = vmatpush.bf16.msra.mxu0 0
    %1311 = vmatpush.bf16.msra.mxu0 0
    %1312 = vmatpush.bf16.msra.mxu0 %v1300
    %1313 = vmatpush.bf16.msra.mxu0 %v1299
    %1314 = vmatmul.bf16.gmra.mxu0 %v1304
    %v1315 = vpop.f32.mrf.mxu0
    %v1316 = vadd.f32 %v1286, %v1315
    %v1317 = vpop.f32.mrf.mxu0
    %1318 = vdwg.mxu0
    %1319 = vst [vmem:[#allocation8] sm:$0xff] %v1316
    // Predicated region
    $region46: #{tpu_custom_call.1} parent=1 // pred_check
      _
    $region47: #{tpu_custom_call.1} parent=1 // pred_check_branch
      %1321 = sbr.rel (0) target = $region49
    $region48: #{tpu_custom_call.1} parent=1 // pred_region
      %1323 = vsyncadd [#allocation4], 0
      %s1325 = sshll.u32 [#allocation8], 4
      %s1326 = int_to_ptr.vmem [resolvable:$true] %s1325
      %s1327 = sshll.u32 %s8, 4
      %s1328 = int_to_ptr.hbm [resolvable:$true] %s1327
      %1330 = dma.vmem_to_hbm [thread:$0]  %s1326, 128, %s1328, [#allocation4]
    $region49: #{tpu_custom_call.1} parent=1 // pred_fallthru
      _
    // Predicated region
    $region50: #{tpu_custom_call.1} parent=1 // pred_check
      _
    $region51: #{tpu_custom_call.1} parent=1 // pred_check_branch
      %1332 = sbr.rel (0) target = $region53
    $region52: #{tpu_custom_call.1} parent=1 // pred_region
      %1334 = dma.done [#allocation4], 128
    $region53: #{tpu_custom_call.1} parent=1 // pred_fallthru
      _
    %1335 = vsyncpa [#allocation3], 1
    %1336 = vsyncpa [#allocation6], 1
    %1337 = vsyncpa [#allocation4], 1

</llo_original>
